<compile_context>
chip_gen: v7x
topology: tpu7x:2x2x1
jax: 0.10.0
libtpu: 0.0.40
codegen_flags: <defaults>
</compile_context>

<pallas_src>
import functools

import jax
import jax.numpy as jnp
from jax.experimental import pallas as pl
from jax.experimental.pallas import tpu as pltpu

LANE = 128  # TPU lane width — pad all feature dims to this for lane-dense vregs


def _round_up(n, m):
    return ((n + m - 1) // m) * m


# ----------------------------------------------------------------------------
# Fused Pallas kernel: 6 x SAGEConv(+ReLU) + Linear, activation kept in VMEM
# ----------------------------------------------------------------------------
def _fused_saliency_gnn_kernel(
    a_ref,     # (N, N)        bf16  row-normalized aggregation matrix
    x_ref,     # (N, Dp)       bf16  padded input node features
    wl0_ref,   # (Dp, Hp)      bf16  SAGEConv0 neighbor weight
    wr0_ref,   # (Dp, Hp)      bf16  SAGEConv0 root weight
    b0_ref,    # (1, Hp)       f32
    wls_ref,   # (L, Hp, Hp)   bf16  stacked neighbor weights (hidden layers)
    wrs_ref,   # (L, Hp, Hp)   bf16  stacked root weights
    bs_ref,    # (L, 1, Hp)    f32
    wo_ref,    # (Hp, Op)      bf16  final Linear weight
    bo_ref,    # (1, Op)       f32   final Linear bias
    o_ref,     # (N, Op)       f32   output (lane-dense)
    h_ref,     # (N, Hp)       bf16  VMEM scratch: activation carried across layers
):
    a = a_ref[...]

    def sage_layer(h_in, wl, wr, b):
        # Mean aggregation on the MXU, then two dots accumulated in f32
        # (no concat => no extra VMEM copy / lane relayout).
        agg = jnp.dot(a, h_in, preferred_element_type=jnp.float32).astype(jnp.bfloat16)
        out = (
            jnp.dot(agg, wl, preferred_element_type=jnp.float32)
            + jnp.dot(h_in, wr, preferred_element_type=jnp.float32)
            + b
        )
        return out  # f32

    # ---- SAGEConv 0: input_dim -> hidden, + ReLU ----------------------------
    h0 = sage_layer(x_ref[...], wl0_ref[...], wr0_ref[...], b0_ref[...])
    h_ref[...] = jnp.maximum(h0, 0.0).astype(jnp.bfloat16)

    # ---- SAGEConv 1..5: hidden -> hidden, + ReLU (stacked weights) ----------
    num_hidden = wls_ref.shape[0]

    def layer(l, carry):
        h = h_ref[...]
        out = sage_layer(h, wls_ref[l], wrs_ref[l], bs_ref[l])
        h_ref[...] = jnp.maximum(out, 0.0).astype(jnp.bfloat16)
        return carry

    jax.lax.fori_loop(0, num_hidden, layer, 0, unroll=True)

    # ---- Final Linear(hidden -> output), no activation ----------------------
    out = jnp.dot(h_ref[...], wo_ref[...], preferred_element_type=jnp.float32) + bo_ref[...]
    o_ref[...] = out  # already f32, lane-dense unmasked store


def fused_saliency_gnn(A, xp, wl0, wr0, b0, wls, wrs, bs, wo, bo):
    """Single pallas_call over full-array VMEM blocks (shapes are small)."""
    N, Dp = xp.shape
    Hp = wl0.shape[1]
    Op = wo.shape[1]
    L = wls.shape[0]

    def full(arr):
        nd = arr.ndim
        return pl.BlockSpec(arr.shape, lambda: (0,) * nd)

    # Advisory cost hint so XLA can schedule the A scatter-add / uploads around it.
    flops = (
        2 * N * N * Dp + 4 * N * Dp * Hp
        + L * (2 * N * N * Hp + 4 * N * Hp * Hp)
        + 2 * N * Hp * Op
    )
    bytes_accessed = (
        2 * (A.size + xp.size + wl0.size + wr0.size + wls.size + wrs.size + wo.size)
        + 4 * (b0.size + bs.size + bo.size + N * Op)
    )

    return pl.pallas_call(
        _fused_saliency_gnn_kernel,
        out_shape=jax.ShapeDtypeStruct((N, Op), jnp.float32),
        in_specs=[full(A), full(xp), full(wl0), full(wr0), full(b0),
                  full(wls), full(wrs), full(bs), full(wo), full(bo)],
        out_specs=pl.BlockSpec((N, Op), lambda: (0, 0)),
        scratch_shapes=[pltpu.VMEM((N, Hp), jnp.bfloat16)],
        cost_estimate=pl.CostEstimate(
            flops=flops, transcendentals=0, bytes_accessed=bytes_accessed),
    )(A, xp, wl0, wr0, b0, wls, wrs, bs, wo, bo)


# ----------------------------------------------------------------------------
# Parameter init (deterministic; mimics PyTorch Linear uniform(-1/sqrt(fan_in)))
# ----------------------------------------------------------------------------
def _init_linear(key, fan_in, fan_out, with_bias=True):
    kw, kb = jax.random.split(key)
    bound = 1.0 / jnp.sqrt(jnp.float32(fan_in))
    w = jax.random.uniform(kw, (fan_in, fan_out), jnp.float32, -bound, bound)
    b = (
        jax.random.uniform(kb, (1, fan_out), jnp.float32, -bound, bound)
        if with_bias
        else jnp.zeros((1, fan_out), jnp.float32)
    )
    return w, b


def init_params(key, input_dim, hidden_dim, output_dim):
    """PyTorch-layout params: per-SAGEConv (W_l, W_r, b) + final Linear."""
    keys = jax.random.split(key, 16)
    k = iter(keys)
    params = {"gnn1": [], "gnn2": []}
    dims1 = [(input_dim, hidden_dim), (hidden_dim, hidden_dim), (hidden_dim, hidden_dim)]
    for d_in, d_out in dims1:
        wl, b = _init_linear(next(k), d_in, d_out, with_bias=True)   # lin_l (neighbors)
        wr, _ = _init_linear(next(k), d_in, d_out, with_bias=False)  # lin_r (root, no bias)
        params["gnn1"].append((wl, wr, b))
    for _ in range(3):
        wl, b = _init_linear(next(k), hidden_dim, hidden_dim, with_bias=True)
        wr, _ = _init_linear(next(k), hidden_dim, hidden_dim, with_bias=False)
        params["gnn2"].append((wl, wr, b))
    params["linear"] = _init_linear(next(k), hidden_dim, output_dim, with_bias=True)
    return params


def _pad2(w, rows, cols, dtype):
    out = jnp.zeros((rows, cols), dtype)
    return out.at[: w.shape[0], : w.shape[1]].set(w.astype(dtype))


def prepare_params(params, input_dim, hidden_dim, output_dim):
    """Host-side, one-time: pad feature dims to 128 lanes (zero-fill), cast MXU
    operands to bf16, and stack the 5 hidden-layer weights/biases."""
    Dp = _round_up(input_dim, LANE)
    Hp = _round_up(hidden_dim, LANE)
    Op = _round_up(output_dim, LANE)

    layers = list(params["gnn1"]) + list(params["gnn2"])
    wl0, wr0, b0 = layers[0]
    prepared = {
        "wl0": _pad2(wl0, Dp, Hp, jnp.bfloat16),
        "wr0": _pad2(wr0, Dp, Hp, jnp.bfloat16),
        "b0": _pad2(b0, 1, Hp, jnp.float32),
        "wls": jnp.stack([_pad2(wl, Hp, Hp, jnp.bfloat16) for wl, _, _ in layers[1:]]),
        "wrs": jnp.stack([_pad2(wr, Hp, Hp, jnp.bfloat16) for _, wr, _ in layers[1:]]),
        "bs": jnp.stack([_pad2(b, 1, Hp, jnp.float32) for _, _, b in layers[1:]]),
        "wo": _pad2(params["linear"][0], Hp, Op, jnp.bfloat16),
        "bo": _pad2(params["linear"][1], 1, Op, jnp.float32),
    }
    return prepared


# ----------------------------------------------------------------------------
# Forward pass (graph densification in plain JAX, hot path in one Pallas call)
# ----------------------------------------------------------------------------
def build_agg_matrix(edge_index, num_nodes):
    """Row-normalized dense aggregation: A[i, j] = 1/deg_in(i) for each edge j->i."""
    src, dst = edge_index[0], edge_index[1]
    A = jnp.zeros((num_nodes, num_nodes), jnp.float32).at[dst, src].add(1.0)
    deg = A.sum(axis=1, keepdims=True)
    return A / jnp.maximum(deg, 1.0)


@functools.partial(jax.jit, static_argnames=("input_dim", "output_dim"))
def saliency_gnn_forward(prepared, x, edge_index, edge_weight=None, *,
                         input_dim, output_dim):
    # edge_weight is ignored: PyG SAGEConv does not support edge weights.
    del edge_weight
    N = x.shape[0]
    Dp = prepared["wl0"].shape[0]
    A = build_agg_matrix(edge_index, N).astype(jnp.bfloat16)
    xp = jnp.zeros((N, Dp), jnp.bfloat16).at[:, :input_dim].set(x.astype(jnp.bfloat16))
    out_padded = fused_saliency_gnn(
        A, xp, prepared["wl0"], prepared["wr0"], prepared["b0"],
        prepared["wls"], prepared["wrs"], prepared["bs"],
        prepared["wo"], prepared["bo"])
    return out_padded[:, :output_dim]


# ----------------------------------------------------------------------------
if __name__ == "__main__":
    key = jax.random.PRNGKey(0)
    k_x, k_e, k_p = jax.random.split(key, 3)

    # Small, forward-consistent shapes: N nodes with input_dim features.
    num_nodes, input_dim, hidden_dim, output_dim, num_edges = 16, 8, 32, 4, 48

    x = jax.random.normal(k_x, (num_nodes, input_dim), jnp.float32)
    edge_index = jax.random.randint(k_e, (2, num_edges), 0, num_nodes, jnp.int32)

    params = init_params(k_p, input_dim, hidden_dim, output_dim)
    prepared = prepare_params(params, input_dim, hidden_dim, output_dim)

    out = saliency_gnn_forward(prepared, x, edge_index, edge_weight=None,
                               input_dim=input_dim, output_dim=output_dim)
    out = jax.block_until_ready(out)
    assert out.shape == (num_nodes, output_dim), out.shape
    assert bool(jnp.all(jnp.isfinite(out)))
    print("KERNEL_OK")
</pallas_src>

<mosaic_0001>
module attributes {stable_mosaic.version = 11 : i64} {
  func.func private @main(%arg0: i32) attributes {dimension_semantics = [#tpu.dimension_semantics<core_parallel>], iteration_bounds = array<i64: 2>, tpu.core_type = #tpu.core_type<sc_scalar_subcore>, window_params = []} {
    return
  }
}

module attributes {stable_mosaic.version = 11 : i64} {
  func.func private @main(%arg0: i32) attributes {dimension_semantics = [#tpu.dimension_semantics<core_parallel>], iteration_bounds = array<i64: 2>, tpu.core_type = #tpu.core_type<sc_scalar_subcore>, window_params = []} {
    return
  }
}

module attributes {stable_mosaic.version = 11 : i64} {
  func.func @_fused_saliency_gnn_kernel(%arg0: memref<16x16xbf16, #tpu.memory_space<vmem>>, %arg1: memref<16x128xbf16, #tpu.memory_space<vmem>>, %arg2: memref<128x128xbf16, #tpu.memory_space<vmem>>, %arg3: memref<128x128xbf16, #tpu.memory_space<vmem>>, %arg4: memref<1x128xf32, #tpu.memory_space<vmem>>, %arg5: memref<5x128x128xbf16, #tpu.memory_space<vmem>>, %arg6: memref<5x128x128xbf16, #tpu.memory_space<vmem>>, %arg7: memref<5x1x128xf32, #tpu.memory_space<vmem>>, %arg8: memref<128x128xbf16, #tpu.memory_space<vmem>>, %arg9: memref<1x128xf32, #tpu.memory_space<vmem>>, %arg10: memref<16x128xf32, #tpu.memory_space<vmem>>, %arg11: memref<16x128xbf16, #tpu.memory_space<vmem>>) attributes {dimension_semantics = [], scalar_prefetch = 0 : i64, scratch_operands = 1 : i64, tpu.core_type = #tpu.core_type<tc>} {
    %c0 = arith.constant 0 : index
    %c0_0 = arith.constant 0 : index
    %0 = vector.load %arg0[%c0, %c0_0] : memref<16x16xbf16, #tpu.memory_space<vmem>>, vector<16x16xbf16>
    %c0_1 = arith.constant 0 : index
    %c0_2 = arith.constant 0 : index
    %1 = vector.load %arg1[%c0_1, %c0_2] : memref<16x128xbf16, #tpu.memory_space<vmem>>, vector<16x128xbf16>
    %c0_3 = arith.constant 0 : index
    %c0_4 = arith.constant 0 : index
    %2 = vector.load %arg2[%c0_3, %c0_4] : memref<128x128xbf16, #tpu.memory_space<vmem>>, vector<128x128xbf16>
    %c0_5 = arith.constant 0 : index
    %c0_6 = arith.constant 0 : index
    %3 = vector.load %arg3[%c0_5, %c0_6] : memref<128x128xbf16, #tpu.memory_space<vmem>>, vector<128x128xbf16>
    %c0_7 = arith.constant 0 : index
    %c0_8 = arith.constant 0 : index
    %4 = vector.load %arg4[%c0_7, %c0_8] : memref<1x128xf32, #tpu.memory_space<vmem>>, vector<1x128xf32>
    %cst = arith.constant dense<0.000000e+00> : vector<16x128xf32>
    %5 = tpu.matmul %0, %1, %cst {dimension_numbers = #tpu.dot_dimension_numbers<[1], [0], [0], [1], [0, 0, 1, 1], [], []>} : vector<16x16xbf16>, vector<16x128xbf16>, vector<16x128xf32> -> vector<16x128xf32>
    %6 = arith.truncf %5 : vector<16x128xf32> to vector<16x128xbf16>
    %cst_9 = arith.constant dense<0.000000e+00> : vector<16x128xf32>
    %7 = tpu.matmul %6, %2, %cst_9 {dimension_numbers = #tpu.dot_dimension_numbers<[1], [0], [0], [1], [0, 0, 1, 1], [], []>} : vector<16x128xbf16>, vector<128x128xbf16>, vector<16x128xf32> -> vector<16x128xf32>
    %cst_10 = arith.constant dense<0.000000e+00> : vector<16x128xf32>
    %8 = tpu.matmul %1, %3, %cst_10 {dimension_numbers = #tpu.dot_dimension_numbers<[1], [0], [0], [1], [0, 0, 1, 1], [], []>} : vector<16x128xbf16>, vector<128x128xbf16>, vector<16x128xf32> -> vector<16x128xf32>
    %9 = arith.addf %7, %8 : vector<16x128xf32>
    %10 = vector.broadcast %4 : vector<1x128xf32> to vector<16x128xf32>
    %11 = arith.addf %9, %10 : vector<16x128xf32>
    %cst_11 = arith.constant 0.000000e+00 : f32
    %12 = vector.broadcast %cst_11 : f32 to vector<16x128xf32>
    %13 = arith.maximumf %11, %12 : vector<16x128xf32>
    %14 = arith.truncf %13 : vector<16x128xf32> to vector<16x128xbf16>
    %c0_12 = arith.constant 0 : index
    %c0_13 = arith.constant 0 : index
    %15 = vector.load %arg11[%c0_12, %c0_13] : memref<16x128xbf16, #tpu.memory_space<vmem>>, vector<16x128xbf16>
    tpu.vector_store %arg11[%c0_12, %c0_13], %14 {strides = array<i32>} : memref<16x128xbf16, #tpu.memory_space<vmem>>, vector<16x128xbf16>,
    %c0_i32 = arith.constant 0 : i32
    %c0_14 = arith.constant 0 : index
    %c0_15 = arith.constant 0 : index
    %16 = vector.load %arg11[%c0_14, %c0_15] : memref<16x128xbf16, #tpu.memory_space<vmem>>, vector<16x128xbf16>
    %17 = arith.index_cast %c0_i32 : i32 to index
    %c0_16 = arith.constant 0 : index
    %c0_17 = arith.constant 0 : index
    %18 = vector.load %arg5[%17, %c0_16, %c0_17] : memref<5x128x128xbf16, #tpu.memory_space<vmem>>, vector<1x128x128xbf16>
    %19 = vector.shape_cast %18 : vector<1x128x128xbf16> to vector<128x128xbf16>
    %20 = arith.index_cast %c0_i32 : i32 to index
    %c0_18 = arith.constant 0 : index
    %c0_19 = arith.constant 0 : index
    %21 = vector.load %arg6[%20, %c0_18, %c0_19] : memref<5x128x128xbf16, #tpu.memory_space<vmem>>, vector<1x128x128xbf16>
    %22 = vector.shape_cast %21 : vector<1x128x128xbf16> to vector<128x128xbf16>
    %23 = arith.index_cast %c0_i32 : i32 to index
    %c0_20 = arith.constant 0 : index
    %c0_21 = arith.constant 0 : index
    %24 = vector.load %arg7[%23, %c0_20, %c0_21] : memref<5x1x128xf32, #tpu.memory_space<vmem>>, vector<1x1x128xf32>
    %25 = vector.shape_cast %24 : vector<1x1x128xf32> to vector<1x128xf32>
    %cst_22 = arith.constant dense<0.000000e+00> : vector<16x128xf32>
    %26 = tpu.matmul %0, %16, %cst_22 {dimension_numbers = #tpu.dot_dimension_numbers<[1], [0], [0], [1], [0, 0, 1, 1], [], []>} : vector<16x16xbf16>, vector<16x128xbf16>, vector<16x128xf32> -> vector<16x128xf32>
    %27 = arith.truncf %26 : vector<16x128xf32> to vector<16x128xbf16>
    %cst_23 = arith.constant dense<0.000000e+00> : vector<16x128xf32>
    %28 = tpu.matmul %27, %19, %cst_23 {dimension_numbers = #tpu.dot_dimension_numbers<[1], [0], [0], [1], [0, 0, 1, 1], [], []>} : vector<16x128xbf16>, vector<128x128xbf16>, vector<16x128xf32> -> vector<16x128xf32>
    %cst_24 = arith.constant dense<0.000000e+00> : vector<16x128xf32>
    %29 = tpu.matmul %16, %22, %cst_24 {dimension_numbers = #tpu.dot_dimension_numbers<[1], [0], [0], [1], [0, 0, 1, 1], [], []>} : vector<16x128xbf16>, vector<128x128xbf16>, vector<16x128xf32> -> vector<16x128xf32>
    %30 = arith.addf %28, %29 : vector<16x128xf32>
    %31 = vector.broadcast %25 : vector<1x128xf32> to vector<16x128xf32>
    %32 = arith.addf %30, %31 : vector<16x128xf32>
    %cst_25 = arith.constant 0.000000e+00 : f32
    %33 = vector.broadcast %cst_25 : f32 to vector<16x128xf32>
    %34 = arith.maximumf %32, %33 : vector<16x128xf32>
    %35 = arith.truncf %34 : vector<16x128xf32> to vector<16x128xbf16>
    %c0_26 = arith.constant 0 : index
    %c0_27 = arith.constant 0 : index
    %36 = vector.load %arg11[%c0_26, %c0_27] : memref<16x128xbf16, #tpu.memory_space<vmem>>, vector<16x128xbf16>
    tpu.vector_store %arg11[%c0_26, %c0_27], %35 {strides = array<i32>} : memref<16x128xbf16, #tpu.memory_space<vmem>>, vector<16x128xbf16>,
    %c1_i32 = arith.constant 1 : i32
    %c0_28 = arith.constant 0 : index
    %c0_29 = arith.constant 0 : index
    %37 = vector.load %arg11[%c0_28, %c0_29] : memref<16x128xbf16, #tpu.memory_space<vmem>>, vector<16x128xbf16>
    %38 = arith.index_cast %c1_i32 : i32 to index
    %c0_30 = arith.constant 0 : index
    %c0_31 = arith.constant 0 : index
    %39 = vector.load %arg5[%38, %c0_30, %c0_31] : memref<5x128x128xbf16, #tpu.memory_space<vmem>>, vector<1x128x128xbf16>
    %40 = vector.shape_cast %39 : vector<1x128x128xbf16> to vector<128x128xbf16>
    %41 = arith.index_cast %c1_i32 : i32 to index
    %c0_32 = arith.constant 0 : index
    %c0_33 = arith.constant 0 : index
    %42 = vector.load %arg6[%41, %c0_32, %c0_33] : memref<5x128x128xbf16, #tpu.memory_space<vmem>>, vector<1x128x128xbf16>
    %43 = vector.shape_cast %42 : vector<1x128x128xbf16> to vector<128x128xbf16>
    %44 = arith.index_cast %c1_i32 : i32 to index
    %c0_34 = arith.constant 0 : index
    %c0_35 = arith.constant 0 : index
    %45 = vector.load %arg7[%44, %c0_34, %c0_35] : memref<5x1x128xf32, #tpu.memory_space<vmem>>, vector<1x1x128xf32>
    %46 = vector.shape_cast %45 : vector<1x1x128xf32> to vector<1x128xf32>
    %cst_36 = arith.constant dense<0.000000e+00> : vector<16x128xf32>
    %47 = tpu.matmul %0, %37, %cst_36 {dimension_numbers = #tpu.dot_dimension_numbers<[1], [0], [0], [1], [0, 0, 1, 1], [], []>} : vector<16x16xbf16>, vector<16x128xbf16>, vector<16x128xf32> -> vector<16x128xf32>
    %48 = arith.truncf %47 : vector<16x128xf32> to vector<16x128xbf16>
    %cst_37 = arith.constant dense<0.000000e+00> : vector<16x128xf32>
    %49 = tpu.matmul %48, %40, %cst_37 {dimension_numbers = #tpu.dot_dimension_numbers<[1], [0], [0], [1], [0, 0, 1, 1], [], []>} : vector<16x128xbf16>, vector<128x128xbf16>, vector<16x128xf32> -> vector<16x128xf32>
    %cst_38 = arith.constant dense<0.000000e+00> : vector<16x128xf32>
    %50 = tpu.matmul %37, %43, %cst_38 {dimension_numbers = #tpu.dot_dimension_numbers<[1], [0], [0], [1], [0, 0, 1, 1], [], []>} : vector<16x128xbf16>, vector<128x128xbf16>, vector<16x128xf32> -> vector<16x128xf32>
    %51 = arith.addf %49, %50 : vector<16x128xf32>
    %52 = vector.broadcast %46 : vector<1x128xf32> to vector<16x128xf32>
    %53 = arith.addf %51, %52 : vector<16x128xf32>
    %cst_39 = arith.constant 0.000000e+00 : f32
    %54 = vector.broadcast %cst_39 : f32 to vector<16x128xf32>
    %55 = arith.maximumf %53, %54 : vector<16x128xf32>
    %56 = arith.truncf %55 : vector<16x128xf32> to vector<16x128xbf16>
    %c0_40 = arith.constant 0 : index
    %c0_41 = arith.constant 0 : index
    %57 = vector.load %arg11[%c0_40, %c0_41] : memref<16x128xbf16, #tpu.memory_space<vmem>>, vector<16x128xbf16>
    tpu.vector_store %arg11[%c0_40, %c0_41], %56 {strides = array<i32>} : memref<16x128xbf16, #tpu.memory_space<vmem>>, vector<16x128xbf16>,
    %c2_i32 = arith.constant 2 : i32
    %c0_42 = arith.constant 0 : index
    %c0_43 = arith.constant 0 : index
    %58 = vector.load %arg11[%c0_42, %c0_43] : memref<16x128xbf16, #tpu.memory_space<vmem>>, vector<16x128xbf16>
    %59 = arith.index_cast %c2_i32 : i32 to index
    %c0_44 = arith.constant 0 : index
    %c0_45 = arith.constant 0 : index
    %60 = vector.load %arg5[%59, %c0_44, %c0_45] : memref<5x128x128xbf16, #tpu.memory_space<vmem>>, vector<1x128x128xbf16>
    %61 = vector.shape_cast %60 : vector<1x128x128xbf16> to vector<128x128xbf16>
    %62 = arith.index_cast %c2_i32 : i32 to index
    %c0_46 = arith.constant 0 : index
    %c0_47 = arith.constant 0 : index
    %63 = vector.load %arg6[%62, %c0_46, %c0_47] : memref<5x128x128xbf16, #tpu.memory_space<vmem>>, vector<1x128x128xbf16>
    %64 = vector.shape_cast %63 : vector<1x128x128xbf16> to vector<128x128xbf16>
    %65 = arith.index_cast %c2_i32 : i32 to index
    %c0_48 = arith.constant 0 : index
    %c0_49 = arith.constant 0 : index
    %66 = vector.load %arg7[%65, %c0_48, %c0_49] : memref<5x1x128xf32, #tpu.memory_space<vmem>>, vector<1x1x128xf32>
    %67 = vector.shape_cast %66 : vector<1x1x128xf32> to vector<1x128xf32>
    %cst_50 = arith.constant dense<0.000000e+00> : vector<16x128xf32>
    %68 = tpu.matmul %0, %58, %cst_50 {dimension_numbers = #tpu.dot_dimension_numbers<[1], [0], [0], [1], [0, 0, 1, 1], [], []>} : vector<16x16xbf16>, vector<16x128xbf16>, vector<16x128xf32> -> vector<16x128xf32>
    %69 = arith.truncf %68 : vector<16x128xf32> to vector<16x128xbf16>
    %cst_51 = arith.constant dense<0.000000e+00> : vector<16x128xf32>
    %70 = tpu.matmul %69, %61, %cst_51 {dimension_numbers = #tpu.dot_dimension_numbers<[1], [0], [0], [1], [0, 0, 1, 1], [], []>} : vector<16x128xbf16>, vector<128x128xbf16>, vector<16x128xf32> -> vector<16x128xf32>
    %cst_52 = arith.constant dense<0.000000e+00> : vector<16x128xf32>
    %71 = tpu.matmul %58, %64, %cst_52 {dimension_numbers = #tpu.dot_dimension_numbers<[1], [0], [0], [1], [0, 0, 1, 1], [], []>} : vector<16x128xbf16>, vector<128x128xbf16>, vector<16x128xf32> -> vector<16x128xf32>
    %72 = arith.addf %70, %71 : vector<16x128xf32>
    %73 = vector.broadcast %67 : vector<1x128xf32> to vector<16x128xf32>
    %74 = arith.addf %72, %73 : vector<16x128xf32>
    %cst_53 = arith.constant 0.000000e+00 : f32
    %75 = vector.broadcast %cst_53 : f32 to vector<16x128xf32>
    %76 = arith.maximumf %74, %75 : vector<16x128xf32>
    %77 = arith.truncf %76 : vector<16x128xf32> to vector<16x128xbf16>
    %c0_54 = arith.constant 0 : index
    %c0_55 = arith.constant 0 : index
    %78 = vector.load %arg11[%c0_54, %c0_55] : memref<16x128xbf16, #tpu.memory_space<vmem>>, vector<16x128xbf16>
    tpu.vector_store %arg11[%c0_54, %c0_55], %77 {strides = array<i32>} : memref<16x128xbf16, #tpu.memory_space<vmem>>, vector<16x128xbf16>,
    %c3_i32 = arith.constant 3 : i32
    %c0_56 = arith.constant 0 : index
    %c0_57 = arith.constant 0 : index
    %79 = vector.load %arg11[%c0_56, %c0_57] : memref<16x128xbf16, #tpu.memory_space<vmem>>, vector<16x128xbf16>
    %80 = arith.index_cast %c3_i32 : i32 to index
    %c0_58 = arith.constant 0 : index
    %c0_59 = arith.constant 0 : index
    %81 = vector.load %arg5[%80, %c0_58, %c0_59] : memref<5x128x128xbf16, #tpu.memory_space<vmem>>, vector<1x128x128xbf16>
    %82 = vector.shape_cast %81 : vector<1x128x128xbf16> to vector<128x128xbf16>
    %83 = arith.index_cast %c3_i32 : i32 to index
    %c0_60 = arith.constant 0 : index
    %c0_61 = arith.constant 0 : index
    %84 = vector.load %arg6[%83, %c0_60, %c0_61] : memref<5x128x128xbf16, #tpu.memory_space<vmem>>, vector<1x128x128xbf16>
    %85 = vector.shape_cast %84 : vector<1x128x128xbf16> to vector<128x128xbf16>
    %86 = arith.index_cast %c3_i32 : i32 to index
    %c0_62 = arith.constant 0 : index
    %c0_63 = arith.constant 0 : index
    %87 = vector.load %arg7[%86, %c0_62, %c0_63] : memref<5x1x128xf32, #tpu.memory_space<vmem>>, vector<1x1x128xf32>
    %88 = vector.shape_cast %87 : vector<1x1x128xf32> to vector<1x128xf32>
    %cst_64 = arith.constant dense<0.000000e+00> : vector<16x128xf32>
    %89 = tpu.matmul %0, %79, %cst_64 {dimension_numbers = #tpu.dot_dimension_numbers<[1], [0], [0], [1], [0, 0, 1, 1], [], []>} : vector<16x16xbf16>, vector<16x128xbf16>, vector<16x128xf32> -> vector<16x128xf32>
    %90 = arith.truncf %89 : vector<16x128xf32> to vector<16x128xbf16>
    %cst_65 = arith.constant dense<0.000000e+00> : vector<16x128xf32>
    %91 = tpu.matmul %90, %82, %cst_65 {dimension_numbers = #tpu.dot_dimension_numbers<[1], [0], [0], [1], [0, 0, 1, 1], [], []>} : vector<16x128xbf16>, vector<128x128xbf16>, vector<16x128xf32> -> vector<16x128xf32>
    %cst_66 = arith.constant dense<0.000000e+00> : vector<16x128xf32>
    %92 = tpu.matmul %79, %85, %cst_66 {dimension_numbers = #tpu.dot_dimension_numbers<[1], [0], [0], [1], [0, 0, 1, 1], [], []>} : vector<16x128xbf16>, vector<128x128xbf16>, vector<16x128xf32> -> vector<16x128xf32>
    %93 = arith.addf %91, %92 : vector<16x128xf32>
    %94 = vector.broadcast %88 : vector<1x128xf32> to vector<16x128xf32>
    %95 = arith.addf %93, %94 : vector<16x128xf32>
    %cst_67 = arith.constant 0.000000e+00 : f32
    %96 = vector.broadcast %cst_67 : f32 to vector<16x128xf32>
    %97 = arith.maximumf %95, %96 : vector<16x128xf32>
    %98 = arith.truncf %97 : vector<16x128xf32> to vector<16x128xbf16>
    %c0_68 = arith.constant 0 : index
    %c0_69 = arith.constant 0 : index
    %99 = vector.load %arg11[%c0_68, %c0_69] : memref<16x128xbf16, #tpu.memory_space<vmem>>, vector<16x128xbf16>
    tpu.vector_store %arg11[%c0_68, %c0_69], %98 {strides = array<i32>} : memref<16x128xbf16, #tpu.memory_space<vmem>>, vector<16x128xbf16>,
    %c4_i32 = arith.constant 4 : i32
    %c0_70 = arith.constant 0 : index
    %c0_71 = arith.constant 0 : index
    %100 = vector.load %arg11[%c0_70, %c0_71] : memref<16x128xbf16, #tpu.memory_space<vmem>>, vector<16x128xbf16>
    %101 = arith.index_cast %c4_i32 : i32 to index
    %c0_72 = arith.constant 0 : index
    %c0_73 = arith.constant 0 : index
    %102 = vector.load %arg5[%101, %c0_72, %c0_73] : memref<5x128x128xbf16, #tpu.memory_space<vmem>>, vector<1x128x128xbf16>
    %103 = vector.shape_cast %102 : vector<1x128x128xbf16> to vector<128x128xbf16>
    %104 = arith.index_cast %c4_i32 : i32 to index
    %c0_74 = arith.constant 0 : index
    %c0_75 = arith.constant 0 : index
    %105 = vector.load %arg6[%104, %c0_74, %c0_75] : memref<5x128x128xbf16, #tpu.memory_space<vmem>>, vector<1x128x128xbf16>
    %106 = vector.shape_cast %105 : vector<1x128x128xbf16> to vector<128x128xbf16>
    %107 = arith.index_cast %c4_i32 : i32 to index
    %c0_76 = arith.constant 0 : index
    %c0_77 = arith.constant 0 : index
    %108 = vector.load %arg7[%107, %c0_76, %c0_77] : memref<5x1x128xf32, #tpu.memory_space<vmem>>, vector<1x1x128xf32>
    %109 = vector.shape_cast %108 : vector<1x1x128xf32> to vector<1x128xf32>
    %cst_78 = arith.constant dense<0.000000e+00> : vector<16x128xf32>
    %110 = tpu.matmul %0, %100, %cst_78 {dimension_numbers = #tpu.dot_dimension_numbers<[1], [0], [0], [1], [0, 0, 1, 1], [], []>} : vector<16x16xbf16>, vector<16x128xbf16>, vector<16x128xf32> -> vector<16x128xf32>
    %111 = arith.truncf %110 : vector<16x128xf32> to vector<16x128xbf16>
    %cst_79 = arith.constant dense<0.000000e+00> : vector<16x128xf32>
    %112 = tpu.matmul %111, %103, %cst_79 {dimension_numbers = #tpu.dot_dimension_numbers<[1], [0], [0], [1], [0, 0, 1, 1], [], []>} : vector<16x128xbf16>, vector<128x128xbf16>, vector<16x128xf32> -> vector<16x128xf32>
    %cst_80 = arith.constant dense<0.000000e+00> : vector<16x128xf32>
    %113 = tpu.matmul %100, %106, %cst_80 {dimension_numbers = #tpu.dot_dimension_numbers<[1], [0], [0], [1], [0, 0, 1, 1], [], []>} : vector<16x128xbf16>, vector<128x128xbf16>, vector<16x128xf32> -> vector<16x128xf32>
    %114 = arith.addf %112, %113 : vector<16x128xf32>
    %115 = vector.broadcast %109 : vector<1x128xf32> to vector<16x128xf32>
    %116 = arith.addf %114, %115 : vector<16x128xf32>
    %cst_81 = arith.constant 0.000000e+00 : f32
    %117 = vector.broadcast %cst_81 : f32 to vector<16x128xf32>
    %118 = arith.maximumf %116, %117 : vector<16x128xf32>
    %119 = arith.truncf %118 : vector<16x128xf32> to vector<16x128xbf16>
    %c0_82 = arith.constant 0 : index
    %c0_83 = arith.constant 0 : index
    %120 = vector.load %arg11[%c0_82, %c0_83] : memref<16x128xbf16, #tpu.memory_space<vmem>>, vector<16x128xbf16>
    tpu.vector_store %arg11[%c0_82, %c0_83], %119 {strides = array<i32>} : memref<16x128xbf16, #tpu.memory_space<vmem>>, vector<16x128xbf16>,
    %c5_i32 = arith.constant 5 : i32
    %c0_84 = arith.constant 0 : index
    %c0_85 = arith.constant 0 : index
    %121 = vector.load %arg11[%c0_84, %c0_85] : memref<16x128xbf16, #tpu.memory_space<vmem>>, vector<16x128xbf16>
    %c0_86 = arith.constant 0 : index
    %c0_87 = arith.constant 0 : index
    %122 = vector.load %arg8[%c0_86, %c0_87] : memref<128x128xbf16, #tpu.memory_space<vmem>>, vector<128x128xbf16>
    %cst_88 = arith.constant dense<0.000000e+00> : vector<16x128xf32>
    %123 = tpu.matmul %121, %122, %cst_88 {dimension_numbers = #tpu.dot_dimension_numbers<[1], [0], [0], [1], [0, 0, 1, 1], [], []>} : vector<16x128xbf16>, vector<128x128xbf16>, vector<16x128xf32> -> vector<16x128xf32>
    %c0_89 = arith.constant 0 : index
    %c0_90 = arith.constant 0 : index
    %124 = vector.load %arg9[%c0_89, %c0_90] : memref<1x128xf32, #tpu.memory_space<vmem>>, vector<1x128xf32>
    %125 = vector.broadcast %124 : vector<1x128xf32> to vector<16x128xf32>
    %126 = arith.addf %123, %125 : vector<16x128xf32>
    %c0_91 = arith.constant 0 : index
    %c0_92 = arith.constant 0 : index
    %127 = vector.load %arg10[%c0_91, %c0_92] : memref<16x128xf32, #tpu.memory_space<vmem>>, vector<16x128xf32>
    tpu.vector_store %arg10[%c0_91, %c0_92], %126 {strides = array<i32>} : memref<16x128xf32, #tpu.memory_space<vmem>>, vector<16x128xf32>,
    return
  }
}

</mosaic_0001>

<llo_original>
// kernel: saliency_gnn_forward.1
$region0: #{saliency_gnn_forward.1}
  #allocation0 [shape = 'u32[]', space=smem, size = 0x4, offset = 0x4, fixed_abs, tag = 'smem constant byte address 0x4 - core index']
  #allocation1 [shape = 'u32[144,128]{1,0:T(1,128)}', space=vmem, size = 0x12000, scoped, tag = 'internal scratch']
  #allocation2 [shape = 'bf16[16,128]{1,0:T(16,128)(2,1)}', space=vmem, size = 0x1000, scoped, tag = 'scratch operand']
  %s0 = inlined_call_operand.vmem [shape: bf16[16,16], index: 0, kind: input, shape index: {}]
  %s1 = inlined_call_operand.vmem [shape: bf16[16,128], index: 1, kind: input, shape index: {}]
  %s2 = inlined_call_operand.vmem [shape: bf16[128,128], index: 2, kind: input, shape index: {}]
  %s3 = inlined_call_operand.vmem [shape: bf16[128,128], index: 3, kind: input, shape index: {}]
  %s4 = inlined_call_operand.vmem [shape: f32[1,128], index: 4, kind: input, shape index: {}]
  %s5 = inlined_call_operand.vmem [shape: bf16[5,128,128], index: 5, kind: input, shape index: {}]
  %s6 = inlined_call_operand.vmem [shape: bf16[5,128,128], index: 6, kind: input, shape index: {}]
  %s7 = inlined_call_operand.vmem [shape: f32[5,1,128], index: 7, kind: input, shape index: {}]
  %s8 = inlined_call_operand.vmem [shape: bf16[128,128], index: 8, kind: input, shape index: {}]
  %s9 = inlined_call_operand.vmem [shape: f32[1,128], index: 9, kind: input, shape index: {}]
  %s10 = inlined_call_operand.vmem [shape: f32[16,128], index: 10, kind: output, shape index: {}]
  %s11 = sld [smem:[#allocation0]]
  $region50: #{saliency_gnn_forward.1} parent=0
    _
  %s13 = ssub.s32 1, %s11
  %s14 = scalar_select 0, %s13, %s11
  // Predicated region
  $region2: #{saliency_gnn_forward.1} parent=0 // pred_check
    _
  $region3: #{saliency_gnn_forward.1} parent=0 // pred_check_branch
    %16 = sbr.rel (0) target = $region5
  $region4: #{saliency_gnn_forward.1} parent=0 // pred_region
    _
  $region5: #{saliency_gnn_forward.1} parent=0 // pred_fallthru
    _
  // Predicated region
  $region6: #{saliency_gnn_forward.1} parent=0 // pred_check
    _
  $region7: #{saliency_gnn_forward.1} parent=0 // pred_check_branch
    %18 = sbr.rel (0) target = $region9
  $region8: #{saliency_gnn_forward.1} parent=0 // pred_region
    _
  $region9: #{saliency_gnn_forward.1} parent=0 // pred_fallthru
    _
  // Predicated region
  $region10: #{saliency_gnn_forward.1} parent=0 // pred_check
    _
  $region11: #{saliency_gnn_forward.1} parent=0 // pred_check_branch
    %20 = sbr.rel (0) target = $region13
  $region12: #{saliency_gnn_forward.1} parent=0 // pred_region
    _
  $region13: #{saliency_gnn_forward.1} parent=0 // pred_fallthru
    _
  // Predicated region
  $region14: #{saliency_gnn_forward.1} parent=0 // pred_check
    _
  $region15: #{saliency_gnn_forward.1} parent=0 // pred_check_branch
    %22 = sbr.rel (0) target = $region17
  $region16: #{saliency_gnn_forward.1} parent=0 // pred_region
    _
  $region17: #{saliency_gnn_forward.1} parent=0 // pred_fallthru
    _
  // Predicated region
  $region18: #{saliency_gnn_forward.1} parent=0 // pred_check
    _
  $region19: #{saliency_gnn_forward.1} parent=0 // pred_check_branch
    %24 = sbr.rel (0) target = $region21
  $region20: #{saliency_gnn_forward.1} parent=0 // pred_region
    _
  $region21: #{saliency_gnn_forward.1} parent=0 // pred_fallthru
    _
  // Predicated region
  $region22: #{saliency_gnn_forward.1} parent=0 // pred_check
    _
  $region23: #{saliency_gnn_forward.1} parent=0 // pred_check_branch
    %26 = sbr.rel (0) target = $region25
  $region24: #{saliency_gnn_forward.1} parent=0 // pred_region
    _
  $region25: #{saliency_gnn_forward.1} parent=0 // pred_fallthru
    _
  // Predicated region
  $region26: #{saliency_gnn_forward.1} parent=0 // pred_check
    _
  $region27: #{saliency_gnn_forward.1} parent=0 // pred_check_branch
    %28 = sbr.rel (0) target = $region29
  $region28: #{saliency_gnn_forward.1} parent=0 // pred_region
    _
  $region29: #{saliency_gnn_forward.1} parent=0 // pred_fallthru
    _
  // Predicated region
  $region30: #{saliency_gnn_forward.1} parent=0 // pred_check
    _
  $region31: #{saliency_gnn_forward.1} parent=0 // pred_check_branch
    %30 = sbr.rel (0) target = $region33
  $region32: #{saliency_gnn_forward.1} parent=0 // pred_region
    _
  $region33: #{saliency_gnn_forward.1} parent=0 // pred_fallthru
    _
  // Predicated region
  $region34: #{saliency_gnn_forward.1} parent=0 // pred_check
    _
  $region35: #{saliency_gnn_forward.1} parent=0 // pred_check_branch
    %32 = sbr.rel (0) target = $region37
  $region36: #{saliency_gnn_forward.1} parent=0 // pred_region
    _
  $region37: #{saliency_gnn_forward.1} parent=0 // pred_fallthru
    _
  // Predicated region
  $region38: #{saliency_gnn_forward.1} parent=0 // pred_check
    _
  $region39: #{saliency_gnn_forward.1} parent=0 // pred_check_branch
    %34 = sbr.rel (0) target = $region41
  $region40: #{saliency_gnn_forward.1} parent=0 // pred_region
    _
  $region41: #{saliency_gnn_forward.1} parent=0 // pred_fallthru
    _
  %v36 = vld [vmem:[%s0] sm:$0xf]
  %v37 = vld [vmem:[%s0 + $0x4] sm:$0xf]
  %v38 = vld [vmem:[%s1] sm:$0xf]
  %v39 = vld [vmem:[%s1 + $0x4] sm:$0xf]
  %v40 = vld [vmem:[%s2] sm:$0xf]
  %v41 = vld [vmem:[%s2 + $0x4] sm:$0xf]
  %v42 = vld [vmem:[%s2 + $0x8] sm:$0xf]
  %v43 = vld [vmem:[%s2 + $0xc] sm:$0xf]
  %v44 = vld [vmem:[%s2 + $0x10] sm:$0xf]
  %v45 = vld [vmem:[%s2 + $0x14] sm:$0xf]
  %v46 = vld [vmem:[%s2 + $0x18] sm:$0xf]
  %v47 = vld [vmem:[%s2 + $0x1c] sm:$0xf]
  %v48 = vld [vmem:[%s2 + $0x20] sm:$0xf]
  %v49 = vld [vmem:[%s2 + $0x24] sm:$0xf]
  %v50 = vld [vmem:[%s2 + $0x28] sm:$0xf]
  %v51 = vld [vmem:[%s2 + $0x2c] sm:$0xf]
  %v52 = vld [vmem:[%s2 + $0x30] sm:$0xf]
  %v53 = vld [vmem:[%s2 + $0x34] sm:$0xf]
  %v54 = vld [vmem:[%s2 + $0x38] sm:$0xf]
  %v55 = vld [vmem:[%s2 + $0x3c] sm:$0xf]
  %v56 = vld [vmem:[%s3] sm:$0xf]
  %v57 = vld [vmem:[%s3 + $0x4] sm:$0xf]
  %v58 = vld [vmem:[%s3 + $0x8] sm:$0xf]
  %v59 = vld [vmem:[%s3 + $0xc] sm:$0xf]
  %v60 = vld [vmem:[%s3 + $0x10] sm:$0xf]
  %v61 = vld [vmem:[%s3 + $0x14] sm:$0xf]
  %v62 = vld [vmem:[%s3 + $0x18] sm:$0xf]
  %v63 = vld [vmem:[%s3 + $0x1c] sm:$0xf]
  %v64 = vld [vmem:[%s3 + $0x20] sm:$0xf]
  %v65 = vld [vmem:[%s3 + $0x24] sm:$0xf]
  %v66 = vld [vmem:[%s3 + $0x28] sm:$0xf]
  %v67 = vld [vmem:[%s3 + $0x2c] sm:$0xf]
  %v68 = vld [vmem:[%s3 + $0x30] sm:$0xf]
  %v69 = vld [vmem:[%s3 + $0x34] sm:$0xf]
  %v70 = vld [vmem:[%s3 + $0x38] sm:$0xf]
  %v71 = vld [vmem:[%s3 + $0x3c] sm:$0xf]
  %v72 = vld [vmem:[%s4] sm:$0x1]
  %v75 = vunpack.c.l.b16 %v36
  %v76 = vunpack.c.l.b16 %v37
  %v77 = vpack.c.b16 %v76, %v75
  %v80 = vunpack.c.l.b16 %v38
  %v81 = vunpack.c.l.b16 %v39
  %v82 = vpack.c.b16 %v81, %v80
  %vm84 = vcmask 130048
  %v86 = vsel %vm84, %v77, 0
  %88 = vmatprep.subr.bf16.mxu0 0
  %89 = vmatpush1.bf16.msra.mxu0 %v82
  %90 = vmatprep.subr.bf16.mxu0 0
  %91 = vmatpush1.bf16.msra.mxu0 0
  %92 = vmatprep.subr.bf16.mxu0 0
  %93 = vmatpush1.bf16.msra.mxu0 0
  %94 = vmatprep.subr.bf16.mxu0 0
  %95 = vmatpush1.bf16.msra.mxu0 0
  %96 = vmatprep.subr.bf16.mxu0 0
  %97 = vmatpush1.bf16.msra.mxu0 0
  %98 = vmatprep.subr.bf16.mxu0 0
  %99 = vmatpush1.bf16.msra.mxu0 0
  %100 = vmatprep.subr.bf16.mxu0 0
  %101 = vmatpush1.bf16.msra.mxu0 0
  %102 = vmatprep.subr.bf16.mxu0 0
  %103 = vmatpush1.bf16.msra.mxu0 0
  %104 = vmatprep.subr.bf16.mxu0 0
  %105 = vmatpush1.bf16.msra.mxu0 0
  %106 = vmatprep.subr.bf16.mxu0 0
  %107 = vmatpush1.bf16.msra.mxu0 0
  %108 = vmatprep.subr.bf16.mxu0 0
  %109 = vmatpush1.bf16.msra.mxu0 0
  %110 = vmatprep.subr.bf16.mxu0 0
  %111 = vmatpush1.bf16.msra.mxu0 0
  %112 = vmatprep.subr.bf16.mxu0 0
  %113 = vmatpush1.bf16.msra.mxu0 0
  %114 = vmatprep.subr.bf16.mxu0 0
  %115 = vmatpush1.bf16.msra.mxu0 0
  %116 = vmatprep.subr.bf16.mxu0 0
  %117 = vmatpush1.bf16.msra.mxu0 0
  %118 = vmatprep.subr.bf16.mxu0 0
  %119 = vmatpush1.bf16.msra.mxu0 0
  %120 = vmatprep.mubr.bf16.mxu0 0
  %121 = vmatmul.mubr.bf16.gmra.mrb[0].mxu0 %v86
  %v122 = vpop.f32.mrb[0].mxu0
  %v123 = vadd.f32 0.0, %v122
  %v124 = vpop.f32.mrb[0].mxu0
  %v125 = vpop.f32.mrb[0].mxu0
  %v126 = vadd.f32 0.0, %v125
  %v127 = vpop.f32.mrb[0].mxu0
  %128 = vdwg.mxu0
  %v129 = vpack.c.bf16 %v126, %v123
  %v146 = vunpack.c.l.b16 %v56
  %v147 = vunpack.c.l.b16 %v57
  %v148 = vunpack.c.l.b16 %v58
  %v149 = vunpack.c.l.b16 %v59
  %v150 = vunpack.c.l.b16 %v60
  %v151 = vunpack.c.l.b16 %v61
  %v152 = vunpack.c.l.b16 %v62
  %v153 = vunpack.c.l.b16 %v63
  %v154 = vunpack.c.l.b16 %v64
  %v155 = vunpack.c.l.b16 %v65
  %v156 = vunpack.c.l.b16 %v66
  %v157 = vunpack.c.l.b16 %v67
  %v158 = vunpack.c.l.b16 %v68
  %v159 = vunpack.c.l.b16 %v69
  %v160 = vunpack.c.l.b16 %v70
  %v161 = vunpack.c.l.b16 %v71
  %v162 = vpack.c.b16 %v147, %v146
  %v163 = vpack.c.b16 %v149, %v148
  %v164 = vpack.c.b16 %v151, %v150
  %v165 = vpack.c.b16 %v153, %v152
  %v166 = vpack.c.b16 %v155, %v154
  %v167 = vpack.c.b16 %v157, %v156
  %v168 = vpack.c.b16 %v159, %v158
  %v169 = vpack.c.b16 %v161, %v160
  %178 = vmatprep.subr.bf16.mxu0 0
  %179 = vmatpush1.bf16.msra.mxu0 %v162
  %180 = vmatprep.subr.bf16.mxu0 0
  %181 = vmatpush1.bf16.msra.mxu0 %v163
  %182 = vmatprep.subr.bf16.mxu0 0
  %183 = vmatpush1.bf16.msra.mxu0 %v164
  %184 = vmatprep.subr.bf16.mxu0 0
  %185 = vmatpush1.bf16.msra.mxu0 %v165
  %186 = vmatprep.subr.bf16.mxu0 0
  %187 = vmatpush1.bf16.msra.mxu0 %v166
  %188 = vmatprep.subr.bf16.mxu0 0
  %189 = vmatpush1.bf16.msra.mxu0 %v167
  %190 = vmatprep.subr.bf16.mxu0 0
  %191 = vmatpush1.bf16.msra.mxu0 %v168
  %192 = vmatprep.subr.bf16.mxu0 0
  %193 = vmatpush1.bf16.msra.mxu0 %v169
  %194 = vmatprep.subr.bf16.mxu0 0
  %195 = vmatpush1.bf16.msra.mxu0 0
  %196 = vmatprep.subr.bf16.mxu0 0
  %197 = vmatpush1.bf16.msra.mxu0 0
  %198 = vmatprep.subr.bf16.mxu0 0
  %199 = vmatpush1.bf16.msra.mxu0 0
  %200 = vmatprep.subr.bf16.mxu0 0
  %201 = vmatpush1.bf16.msra.mxu0 0
  %202 = vmatprep.subr.bf16.mxu0 0
  %203 = vmatpush1.bf16.msra.mxu0 0
  %204 = vmatprep.subr.bf16.mxu0 0
  %205 = vmatpush1.bf16.msra.mxu0 0
  %206 = vmatprep.subr.bf16.mxu0 0
  %207 = vmatpush1.bf16.msra.mxu0 0
  %208 = vmatprep.subr.bf16.mxu0 0
  %209 = vmatpush1.bf16.msra.mxu0 0
  %210 = vmatprep.mubr.bf16.mxu0 0
  %211 = vmatmul.mubr.bf16.gmra.mrb[0].mxu0 %v82
  %v212 = vpop.f32.mrb[0].mxu0
  %v213 = vadd.f32 0.0, %v212
  %v214 = vpop.f32.mrb[0].mxu0
  %v215 = vpop.f32.mrb[0].mxu0
  %v216 = vadd.f32 0.0, %v215
  %v217 = vpop.f32.mrb[0].mxu0
  %218 = vdwg.mxu0
  %v235 = vunpack.c.l.b16 %v40
  %v236 = vunpack.c.l.b16 %v41
  %v237 = vunpack.c.l.b16 %v42
  %v238 = vunpack.c.l.b16 %v43
  %v239 = vunpack.c.l.b16 %v44
  %v240 = vunpack.c.l.b16 %v45
  %v241 = vunpack.c.l.b16 %v46
  %v242 = vunpack.c.l.b16 %v47
  %v243 = vunpack.c.l.b16 %v48
  %v244 = vunpack.c.l.b16 %v49
  %v245 = vunpack.c.l.b16 %v50
  %v246 = vunpack.c.l.b16 %v51
  %v247 = vunpack.c.l.b16 %v52
  %v248 = vunpack.c.l.b16 %v53
  %v249 = vunpack.c.l.b16 %v54
  %v250 = vunpack.c.l.b16 %v55
  %v251 = vpack.c.b16 %v236, %v235
  %v252 = vpack.c.b16 %v238, %v237
  %v253 = vpack.c.b16 %v240, %v239
  %v254 = vpack.c.b16 %v242, %v241
  %v255 = vpack.c.b16 %v244, %v243
  %v256 = vpack.c.b16 %v246, %v245
  %v257 = vpack.c.b16 %v248, %v247
  %v258 = vpack.c.b16 %v250, %v249
  %267 = vmatprep.subr.bf16.mxu0 0
  %268 = vmatpush1.bf16.msra.mxu0 %v251
  %269 = vmatprep.subr.bf16.mxu0 0
  %270 = vmatpush1.bf16.msra.mxu0 %v252
  %271 = vmatprep.subr.bf16.mxu0 0
  %272 = vmatpush1.bf16.msra.mxu0 %v253
  %273 = vmatprep.subr.bf16.mxu0 0
  %274 = vmatpush1.bf16.msra.mxu0 %v254
  %275 = vmatprep.subr.bf16.mxu0 0
  %276 = vmatpush1.bf16.msra.mxu0 %v255
  %277 = vmatprep.subr.bf16.mxu0 0
  %278 = vmatpush1.bf16.msra.mxu0 %v256
  %279 = vmatprep.subr.bf16.mxu0 0
  %280 = vmatpush1.bf16.msra.mxu0 %v257
  %281 = vmatprep.subr.bf16.mxu0 0
  %282 = vmatpush1.bf16.msra.mxu0 %v258
  %283 = vmatprep.subr.bf16.mxu0 0
  %284 = vmatpush1.bf16.msra.mxu0 0
  %285 = vmatprep.subr.bf16.mxu0 0
  %286 = vmatpush1.bf16.msra.mxu0 0
  %287 = vmatprep.subr.bf16.mxu0 0
  %288 = vmatpush1.bf16.msra.mxu0 0
  %289 = vmatprep.subr.bf16.mxu0 0
  %290 = vmatpush1.bf16.msra.mxu0 0
  %291 = vmatprep.subr.bf16.mxu0 0
  %292 = vmatpush1.bf16.msra.mxu0 0
  %293 = vmatprep.subr.bf16.mxu0 0
  %294 = vmatpush1.bf16.msra.mxu0 0
  %295 = vmatprep.subr.bf16.mxu0 0
  %296 = vmatpush1.bf16.msra.mxu0 0
  %297 = vmatprep.subr.bf16.mxu0 0
  %298 = vmatpush1.bf16.msra.mxu0 0
  %299 = vmatprep.mubr.bf16.mxu0 0
  %300 = vmatmul.mubr.bf16.gmra.mrb[0].mxu0 %v129
  %v301 = vpop.f32.mrb[0].mxu0
  %v302 = vadd.f32 %v213, %v301
  %v303 = vpop.f32.mrb[0].mxu0
  %v304 = vpop.f32.mrb[0].mxu0
  %v305 = vadd.f32 %v216, %v304
  %v306 = vpop.f32.mrb[0].mxu0
  %307 = vdwg.mxu0
  %v309 = vlaneseq
  %v310 = vshrl.u32 %v309, 7
  %v311 = vsub.s32 0, %v310
  %v312 = vrot.slane %v72, %v311
  %v314 = vadd.f32 %v302, %v312
  %v315 = vadd.f32 %v305, %v312
  %v316 = vmax.f32 %v314, 0.0
  %v317 = vmax.f32 %v315, 0.0
  %v318 = vpack.c.bf16 %v317, %v316
  %319 = vst [vmem:[#allocation2] sm:$0xff] %v318
  %v320 = vld [vmem:[#allocation2] sm:$0xff]
  %v321 = vld [vmem:[%s5] sm:$0xf]
  %v322 = vld [vmem:[%s5 + $0x4] sm:$0xf]
  %v323 = vld [vmem:[%s5 + $0x8] sm:$0xf]
  %v324 = vld [vmem:[%s5 + $0xc] sm:$0xf]
  %v325 = vld [vmem:[%s5 + $0x10] sm:$0xf]
  %v326 = vld [vmem:[%s5 + $0x14] sm:$0xf]
  %v327 = vld [vmem:[%s5 + $0x18] sm:$0xf]
  %v328 = vld [vmem:[%s5 + $0x1c] sm:$0xf]
  %v329 = vld [vmem:[%s5 + $0x20] sm:$0xf]
  %v330 = vld [vmem:[%s5 + $0x24] sm:$0xf]
  %v331 = vld [vmem:[%s5 + $0x28] sm:$0xf]
  %v332 = vld [vmem:[%s5 + $0x2c] sm:$0xf]
  %v333 = vld [vmem:[%s5 + $0x30] sm:$0xf]
  %v334 = vld [vmem:[%s5 + $0x34] sm:$0xf]
  %v335 = vld [vmem:[%s5 + $0x38] sm:$0xf]
  %v336 = vld [vmem:[%s5 + $0x3c] sm:$0xf]
  %v337 = vld [vmem:[%s6] sm:$0xf]
  %v338 = vld [vmem:[%s6 + $0x4] sm:$0xf]
  %v339 = vld [vmem:[%s6 + $0x8] sm:$0xf]
  %v340 = vld [vmem:[%s6 + $0xc] sm:$0xf]
  %v341 = vld [vmem:[%s6 + $0x10] sm:$0xf]
  %v342 = vld [vmem:[%s6 + $0x14] sm:$0xf]
  %v343 = vld [vmem:[%s6 + $0x18] sm:$0xf]
  %v344 = vld [vmem:[%s6 + $0x1c] sm:$0xf]
  %v345 = vld [vmem:[%s6 + $0x20] sm:$0xf]
  %v346 = vld [vmem:[%s6 + $0x24] sm:$0xf]
  %v347 = vld [vmem:[%s6 + $0x28] sm:$0xf]
  %v348 = vld [vmem:[%s6 + $0x2c] sm:$0xf]
  %v349 = vld [vmem:[%s6 + $0x30] sm:$0xf]
  %v350 = vld [vmem:[%s6 + $0x34] sm:$0xf]
  %v351 = vld [vmem:[%s6 + $0x38] sm:$0xf]
  %v352 = vld [vmem:[%s6 + $0x3c] sm:$0xf]
  %v353 = vld [vmem:[%s7] sm:$0x1]
  %354 = vmatprep.subr.bf16.mxu0 0
  %355 = vmatpush1.bf16.msra.mxu0 %v320
  %356 = vmatprep.subr.bf16.mxu0 0
  %357 = vmatpush1.bf16.msra.mxu0 0
  %358 = vmatprep.subr.bf16.mxu0 0
  %359 = vmatpush1.bf16.msra.mxu0 0
  %360 = vmatprep.subr.bf16.mxu0 0
  %361 = vmatpush1.bf16.msra.mxu0 0
  %362 = vmatprep.subr.bf16.mxu0 0
  %363 = vmatpush1.bf16.msra.mxu0 0
  %364 = vmatprep.subr.bf16.mxu0 0
  %365 = vmatpush1.bf16.msra.mxu0 0
  %366 = vmatprep.subr.bf16.mxu0 0
  %367 = vmatpush1.bf16.msra.mxu0 0
  %368 = vmatprep.subr.bf16.mxu0 0
  %369 = vmatpush1.bf16.msra.mxu0 0
  %370 = vmatprep.subr.bf16.mxu0 0
  %371 = vmatpush1.bf16.msra.mxu0 0
  %372 = vmatprep.subr.bf16.mxu0 0
  %373 = vmatpush1.bf16.msra.mxu0 0
  %374 = vmatprep.subr.bf16.mxu0 0
  %375 = vmatpush1.bf16.msra.mxu0 0
  %376 = vmatprep.subr.bf16.mxu0 0
  %377 = vmatpush1.bf16.msra.mxu0 0
  %378 = vmatprep.subr.bf16.mxu0 0
  %379 = vmatpush1.bf16.msra.mxu0 0
  %380 = vmatprep.subr.bf16.mxu0 0
  %381 = vmatpush1.bf16.msra.mxu0 0
  %382 = vmatprep.subr.bf16.mxu0 0
  %383 = vmatpush1.bf16.msra.mxu0 0
  %384 = vmatprep.subr.bf16.mxu0 0
  %385 = vmatpush1.bf16.msra.mxu0 0
  %386 = vmatprep.mubr.bf16.mxu0 0
  %387 = vmatmul.mubr.bf16.gmra.mrb[0].mxu0 %v86
  %v388 = vpop.f32.mrb[0].mxu0
  %v389 = vadd.f32 0.0, %v388
  %v390 = vpop.f32.mrb[0].mxu0
  %v391 = vpop.f32.mrb[0].mxu0
  %v392 = vadd.f32 0.0, %v391
  %v393 = vpop.f32.mrb[0].mxu0
  %394 = vdwg.mxu0
  %v395 = vpack.c.bf16 %v392, %v389
  %v412 = vunpack.c.l.b16 %v337
  %v413 = vunpack.c.l.b16 %v338
  %v414 = vunpack.c.l.b16 %v339
  %v415 = vunpack.c.l.b16 %v340
  %v416 = vunpack.c.l.b16 %v341
  %v417 = vunpack.c.l.b16 %v342
  %v418 = vunpack.c.l.b16 %v343
  %v419 = vunpack.c.l.b16 %v344
  %v420 = vunpack.c.l.b16 %v345
  %v421 = vunpack.c.l.b16 %v346
  %v422 = vunpack.c.l.b16 %v347
  %v423 = vunpack.c.l.b16 %v348
  %v424 = vunpack.c.l.b16 %v349
  %v425 = vunpack.c.l.b16 %v350
  %v426 = vunpack.c.l.b16 %v351
  %v427 = vunpack.c.l.b16 %v352
  %v428 = vpack.c.b16 %v413, %v412
  %v429 = vpack.c.b16 %v415, %v414
  %v430 = vpack.c.b16 %v417, %v416
  %v431 = vpack.c.b16 %v419, %v418
  %v432 = vpack.c.b16 %v421, %v420
  %v433 = vpack.c.b16 %v423, %v422
  %v434 = vpack.c.b16 %v425, %v424
  %v435 = vpack.c.b16 %v427, %v426
  %444 = vmatprep.subr.bf16.mxu0 0
  %445 = vmatpush1.bf16.msra.mxu0 %v428
  %446 = vmatprep.subr.bf16.mxu0 0
  %447 = vmatpush1.bf16.msra.mxu0 %v429
  %448 = vmatprep.subr.bf16.mxu0 0
  %449 = vmatpush1.bf16.msra.mxu0 %v430
  %450 = vmatprep.subr.bf16.mxu0 0
  %451 = vmatpush1.bf16.msra.mxu0 %v431
  %452 = vmatprep.subr.bf16.mxu0 0
  %453 = vmatpush1.bf16.msra.mxu0 %v432
  %454 = vmatprep.subr.bf16.mxu0 0
  %455 = vmatpush1.bf16.msra.mxu0 %v433
  %456 = vmatprep.subr.bf16.mxu0 0
  %457 = vmatpush1.bf16.msra.mxu0 %v434
  %458 = vmatprep.subr.bf16.mxu0 0
  %459 = vmatpush1.bf16.msra.mxu0 %v435
  %460 = vmatprep.subr.bf16.mxu0 0
  %461 = vmatpush1.bf16.msra.mxu0 0
  %462 = vmatprep.subr.bf16.mxu0 0
  %463 = vmatpush1.bf16.msra.mxu0 0
  %464 = vmatprep.subr.bf16.mxu0 0
  %465 = vmatpush1.bf16.msra.mxu0 0
  %466 = vmatprep.subr.bf16.mxu0 0
  %467 = vmatpush1.bf16.msra.mxu0 0
  %468 = vmatprep.subr.bf16.mxu0 0
  %469 = vmatpush1.bf16.msra.mxu0 0
  %470 = vmatprep.subr.bf16.mxu0 0
  %471 = vmatpush1.bf16.msra.mxu0 0
  %472 = vmatprep.subr.bf16.mxu0 0
  %473 = vmatpush1.bf16.msra.mxu0 0
  %474 = vmatprep.subr.bf16.mxu0 0
  %475 = vmatpush1.bf16.msra.mxu0 0
  %476 = vmatprep.mubr.bf16.mxu0 0
  %477 = vmatmul.mubr.bf16.gmra.mrb[0].mxu0 %v320
  %v478 = vpop.f32.mrb[0].mxu0
  %v479 = vadd.f32 0.0, %v478
  %v480 = vpop.f32.mrb[0].mxu0
  %v481 = vpop.f32.mrb[0].mxu0
  %v482 = vadd.f32 0.0, %v481
  %v483 = vpop.f32.mrb[0].mxu0
  %484 = vdwg.mxu0
  %v501 = vunpack.c.l.b16 %v321
  %v502 = vunpack.c.l.b16 %v322
  %v503 = vunpack.c.l.b16 %v323
  %v504 = vunpack.c.l.b16 %v324
  %v505 = vunpack.c.l.b16 %v325
  %v506 = vunpack.c.l.b16 %v326
  %v507 = vunpack.c.l.b16 %v327
  %v508 = vunpack.c.l.b16 %v328
  %v509 = vunpack.c.l.b16 %v329
  %v510 = vunpack.c.l.b16 %v330
  %v511 = vunpack.c.l.b16 %v331
  %v512 = vunpack.c.l.b16 %v332
  %v513 = vunpack.c.l.b16 %v333
  %v514 = vunpack.c.l.b16 %v334
  %v515 = vunpack.c.l.b16 %v335
  %v516 = vunpack.c.l.b16 %v336
  %v517 = vpack.c.b16 %v502, %v501
  %v518 = vpack.c.b16 %v504, %v503
  %v519 = vpack.c.b16 %v506, %v505
  %v520 = vpack.c.b16 %v508, %v507
  %v521 = vpack.c.b16 %v510, %v509
  %v522 = vpack.c.b16 %v512, %v511
  %v523 = vpack.c.b16 %v514, %v513
  %v524 = vpack.c.b16 %v516, %v515
  %533 = vmatprep.subr.bf16.mxu0 0
  %534 = vmatpush1.bf16.msra.mxu0 %v517
  %535 = vmatprep.subr.bf16.mxu0 0
  %536 = vmatpush1.bf16.msra.mxu0 %v518
  %537 = vmatprep.subr.bf16.mxu0 0
  %538 = vmatpush1.bf16.msra.mxu0 %v519
  %539 = vmatprep.subr.bf16.mxu0 0
  %540 = vmatpush1.bf16.msra.mxu0 %v520
  %541 = vmatprep.subr.bf16.mxu0 0
  %542 = vmatpush1.bf16.msra.mxu0 %v521
  %543 = vmatprep.subr.bf16.mxu0 0
  %544 = vmatpush1.bf16.msra.mxu0 %v522
  %545 = vmatprep.subr.bf16.mxu0 0
  %546 = vmatpush1.bf16.msra.mxu0 %v523
  %547 = vmatprep.subr.bf16.mxu0 0
  %548 = vmatpush1.bf16.msra.mxu0 %v524
  %549 = vmatprep.subr.bf16.mxu0 0
  %550 = vmatpush1.bf16.msra.mxu0 0
  %551 = vmatprep.subr.bf16.mxu0 0
  %552 = vmatpush1.bf16.msra.mxu0 0
  %553 = vmatprep.subr.bf16.mxu0 0
  %554 = vmatpush1.bf16.msra.mxu0 0
  %555 = vmatprep.subr.bf16.mxu0 0
  %556 = vmatpush1.bf16.msra.mxu0 0
  %557 = vmatprep.subr.bf16.mxu0 0
  %558 = vmatpush1.bf16.msra.mxu0 0
  %559 = vmatprep.subr.bf16.mxu0 0
  %560 = vmatpush1.bf16.msra.mxu0 0
  %561 = vmatprep.subr.bf16.mxu0 0
  %562 = vmatpush1.bf16.msra.mxu0 0
  %563 = vmatprep.subr.bf16.mxu0 0
  %564 = vmatpush1.bf16.msra.mxu0 0
  %565 = vmatprep.mubr.bf16.mxu0 0
  %566 = vmatmul.mubr.bf16.gmra.mrb[0].mxu0 %v395
  %v567 = vpop.f32.mrb[0].mxu0
  %v568 = vadd.f32 %v479, %v567
  %v569 = vpop.f32.mrb[0].mxu0
  %v570 = vpop.f32.mrb[0].mxu0
  %v571 = vadd.f32 %v482, %v570
  %v572 = vpop.f32.mrb[0].mxu0
  %573 = vdwg.mxu0
  %v575 = vlaneseq
  %v576 = vshrl.u32 %v575, 7
  %v577 = vsub.s32 0, %v576
  %v578 = vrot.slane %v353, %v577
  %v580 = vadd.f32 %v568, %v578
  %v581 = vadd.f32 %v571, %v578
  %v582 = vmax.f32 %v580, 0.0
  %v583 = vmax.f32 %v581, 0.0
  %v584 = vpack.c.bf16 %v583, %v582
  %585 = vst [vmem:[#allocation2] sm:$0xff] %v584
  %v586 = vld [vmem:[#allocation2] sm:$0xff]
  %s587 = scalar_lea.vmem %s5, 64
  %v588 = vld [vmem:[%s587] sm:$0xf]
  %v589 = vld [vmem:[%s587 + $0x4] sm:$0xf]
  %v590 = vld [vmem:[%s587 + $0x8] sm:$0xf]
  %v591 = vld [vmem:[%s587 + $0xc] sm:$0xf]
  %v592 = vld [vmem:[%s587 + $0x10] sm:$0xf]
  %v593 = vld [vmem:[%s587 + $0x14] sm:$0xf]
  %v594 = vld [vmem:[%s587 + $0x18] sm:$0xf]
  %v595 = vld [vmem:[%s587 + $0x1c] sm:$0xf]
  %v596 = vld [vmem:[%s587 + $0x20] sm:$0xf]
  %v597 = vld [vmem:[%s587 + $0x24] sm:$0xf]
  %v598 = vld [vmem:[%s587 + $0x28] sm:$0xf]
  %v599 = vld [vmem:[%s587 + $0x2c] sm:$0xf]
  %v600 = vld [vmem:[%s587 + $0x30] sm:$0xf]
  %v601 = vld [vmem:[%s587 + $0x34] sm:$0xf]
  %v602 = vld [vmem:[%s587 + $0x38] sm:$0xf]
  %v603 = vld [vmem:[%s587 + $0x3c] sm:$0xf]
  %s604 = scalar_lea.vmem %s6, 64
  %v605 = vld [vmem:[%s604] sm:$0xf]
  %v606 = vld [vmem:[%s604 + $0x4] sm:$0xf]
  %v607 = vld [vmem:[%s604 + $0x8] sm:$0xf]
  %v608 = vld [vmem:[%s604 + $0xc] sm:$0xf]
  %v609 = vld [vmem:[%s604 + $0x10] sm:$0xf]
  %v610 = vld [vmem:[%s604 + $0x14] sm:$0xf]
  %v611 = vld [vmem:[%s604 + $0x18] sm:$0xf]
  %v612 = vld [vmem:[%s604 + $0x1c] sm:$0xf]
  %v613 = vld [vmem:[%s604 + $0x20] sm:$0xf]
  %v614 = vld [vmem:[%s604 + $0x24] sm:$0xf]
  %v615 = vld [vmem:[%s604 + $0x28] sm:$0xf]
  %v616 = vld [vmem:[%s604 + $0x2c] sm:$0xf]
  %v617 = vld [vmem:[%s604 + $0x30] sm:$0xf]
  %v618 = vld [vmem:[%s604 + $0x34] sm:$0xf]
  %v619 = vld [vmem:[%s604 + $0x38] sm:$0xf]
  %v620 = vld [vmem:[%s604 + $0x3c] sm:$0xf]
  %s621 = scalar_lea.vmem %s7, 1
  %v622 = vld [vmem:[%s621] sm:$0x1]
  %623 = vmatprep.subr.bf16.mxu0 0
  %624 = vmatpush1.bf16.msra.mxu0 %v586
  %625 = vmatprep.subr.bf16.mxu0 0
  %626 = vmatpush1.bf16.msra.mxu0 0
  %627 = vmatprep.subr.bf16.mxu0 0
  %628 = vmatpush1.bf16.msra.mxu0 0
  %629 = vmatprep.subr.bf16.mxu0 0
  %630 = vmatpush1.bf16.msra.mxu0 0
  %631 = vmatprep.subr.bf16.mxu0 0
  %632 = vmatpush1.bf16.msra.mxu0 0
  %633 = vmatprep.subr.bf16.mxu0 0
  %634 = vmatpush1.bf16.msra.mxu0 0
  %635 = vmatprep.subr.bf16.mxu0 0
  %636 = vmatpush1.bf16.msra.mxu0 0
  %637 = vmatprep.subr.bf16.mxu0 0
  %638 = vmatpush1.bf16.msra.mxu0 0
  %639 = vmatprep.subr.bf16.mxu0 0
  %640 = vmatpush1.bf16.msra.mxu0 0
  %641 = vmatprep.subr.bf16.mxu0 0
  %642 = vmatpush1.bf16.msra.mxu0 0
  %643 = vmatprep.subr.bf16.mxu0 0
  %644 = vmatpush1.bf16.msra.mxu0 0
  %645 = vmatprep.subr.bf16.mxu0 0
  %646 = vmatpush1.bf16.msra.mxu0 0
  %647 = vmatprep.subr.bf16.mxu0 0
  %648 = vmatpush1.bf16.msra.mxu0 0
  %649 = vmatprep.subr.bf16.mxu0 0
  %650 = vmatpush1.bf16.msra.mxu0 0
  %651 = vmatprep.subr.bf16.mxu0 0
  %652 = vmatpush1.bf16.msra.mxu0 0
  %653 = vmatprep.subr.bf16.mxu0 0
  %654 = vmatpush1.bf16.msra.mxu0 0
  %655 = vmatprep.mubr.bf16.mxu0 0
  %656 = vmatmul.mubr.bf16.gmra.mrb[0].mxu0 %v86
  %v657 = vpop.f32.mrb[0].mxu0
  %v658 = vadd.f32 0.0, %v657
  %v659 = vpop.f32.mrb[0].mxu0
  %v660 = vpop.f32.mrb[0].mxu0
  %v661 = vadd.f32 0.0, %v660
  %v662 = vpop.f32.mrb[0].mxu0
  %663 = vdwg.mxu0
  %v664 = vpack.c.bf16 %v661, %v658
  %v681 = vunpack.c.l.b16 %v605
  %v682 = vunpack.c.l.b16 %v606
  %v683 = vunpack.c.l.b16 %v607
  %v684 = vunpack.c.l.b16 %v608
  %v685 = vunpack.c.l.b16 %v609
  %v686 = vunpack.c.l.b16 %v610
  %v687 = vunpack.c.l.b16 %v611
  %v688 = vunpack.c.l.b16 %v612
  %v689 = vunpack.c.l.b16 %v613
  %v690 = vunpack.c.l.b16 %v614
  %v691 = vunpack.c.l.b16 %v615
  %v692 = vunpack.c.l.b16 %v616
  %v693 = vunpack.c.l.b16 %v617
  %v694 = vunpack.c.l.b16 %v618
  %v695 = vunpack.c.l.b16 %v619
  %v696 = vunpack.c.l.b16 %v620
  %v697 = vpack.c.b16 %v682, %v681
  %v698 = vpack.c.b16 %v684, %v683
  %v699 = vpack.c.b16 %v686, %v685
  %v700 = vpack.c.b16 %v688, %v687
  %v701 = vpack.c.b16 %v690, %v689
  %v702 = vpack.c.b16 %v692, %v691
  %v703 = vpack.c.b16 %v694, %v693
  %v704 = vpack.c.b16 %v696, %v695
  %713 = vmatprep.subr.bf16.mxu0 0
  %714 = vmatpush1.bf16.msra.mxu0 %v697
  %715 = vmatprep.subr.bf16.mxu0 0
  %716 = vmatpush1.bf16.msra.mxu0 %v698
  %717 = vmatprep.subr.bf16.mxu0 0
  %718 = vmatpush1.bf16.msra.mxu0 %v699
  %719 = vmatprep.subr.bf16.mxu0 0
  %720 = vmatpush1.bf16.msra.mxu0 %v700
  %721 = vmatprep.subr.bf16.mxu0 0
  %722 = vmatpush1.bf16.msra.mxu0 %v701
  %723 = vmatprep.subr.bf16.mxu0 0
  %724 = vmatpush1.bf16.msra.mxu0 %v702
  %725 = vmatprep.subr.bf16.mxu0 0
  %726 = vmatpush1.bf16.msra.mxu0 %v703
  %727 = vmatprep.subr.bf16.mxu0 0
  %728 = vmatpush1.bf16.msra.mxu0 %v704
  %729 = vmatprep.subr.bf16.mxu0 0
  %730 = vmatpush1.bf16.msra.mxu0 0
  %731 = vmatprep.subr.bf16.mxu0 0
  %732 = vmatpush1.bf16.msra.mxu0 0
  %733 = vmatprep.subr.bf16.mxu0 0
  %734 = vmatpush1.bf16.msra.mxu0 0
  %735 = vmatprep.subr.bf16.mxu0 0
  %736 = vmatpush1.bf16.msra.mxu0 0
  %737 = vmatprep.subr.bf16.mxu0 0
  %738 = vmatpush1.bf16.msra.mxu0 0
  %739 = vmatprep.subr.bf16.mxu0 0
  %740 = vmatpush1.bf16.msra.mxu0 0
  %741 = vmatprep.subr.bf16.mxu0 0
  %742 = vmatpush1.bf16.msra.mxu0 0
  %743 = vmatprep.subr.bf16.mxu0 0
  %744 = vmatpush1.bf16.msra.mxu0 0
  %745 = vmatprep.mubr.bf16.mxu0 0
  %746 = vmatmul.mubr.bf16.gmra.mrb[0].mxu0 %v586
  %v747 = vpop.f32.mrb[0].mxu0
  %v748 = vadd.f32 0.0, %v747
  %v749 = vpop.f32.mrb[0].mxu0
  %v750 = vpop.f32.mrb[0].mxu0
  %v751 = vadd.f32 0.0, %v750
  %v752 = vpop.f32.mrb[0].mxu0
  %753 = vdwg.mxu0
  %v770 = vunpack.c.l.b16 %v588
  %v771 = vunpack.c.l.b16 %v589
  %v772 = vunpack.c.l.b16 %v590
  %v773 = vunpack.c.l.b16 %v591
  %v774 = vunpack.c.l.b16 %v592
  %v775 = vunpack.c.l.b16 %v593
  %v776 = vunpack.c.l.b16 %v594
  %v777 = vunpack.c.l.b16 %v595
  %v778 = vunpack.c.l.b16 %v596
  %v779 = vunpack.c.l.b16 %v597
  %v780 = vunpack.c.l.b16 %v598
  %v781 = vunpack.c.l.b16 %v599
  %v782 = vunpack.c.l.b16 %v600
  %v783 = vunpack.c.l.b16 %v601
  %v784 = vunpack.c.l.b16 %v602
  %v785 = vunpack.c.l.b16 %v603
  %v786 = vpack.c.b16 %v771, %v770
  %v787 = vpack.c.b16 %v773, %v772
  %v788 = vpack.c.b16 %v775, %v774
  %v789 = vpack.c.b16 %v777, %v776
  %v790 = vpack.c.b16 %v779, %v778
  %v791 = vpack.c.b16 %v781, %v780
  %v792 = vpack.c.b16 %v783, %v782
  %v793 = vpack.c.b16 %v785, %v784
  %802 = vmatprep.subr.bf16.mxu0 0
  %803 = vmatpush1.bf16.msra.mxu0 %v786
  %804 = vmatprep.subr.bf16.mxu0 0
  %805 = vmatpush1.bf16.msra.mxu0 %v787
  %806 = vmatprep.subr.bf16.mxu0 0
  %807 = vmatpush1.bf16.msra.mxu0 %v788
  %808 = vmatprep.subr.bf16.mxu0 0
  %809 = vmatpush1.bf16.msra.mxu0 %v789
  %810 = vmatprep.subr.bf16.mxu0 0
  %811 = vmatpush1.bf16.msra.mxu0 %v790
  %812 = vmatprep.subr.bf16.mxu0 0
  %813 = vmatpush1.bf16.msra.mxu0 %v791
  %814 = vmatprep.subr.bf16.mxu0 0
  %815 = vmatpush1.bf16.msra.mxu0 %v792
  %816 = vmatprep.subr.bf16.mxu0 0
  %817 = vmatpush1.bf16.msra.mxu0 %v793
  %818 = vmatprep.subr.bf16.mxu0 0
  %819 = vmatpush1.bf16.msra.mxu0 0
  %820 = vmatprep.subr.bf16.mxu0 0
  %821 = vmatpush1.bf16.msra.mxu0 0
  %822 = vmatprep.subr.bf16.mxu0 0
  %823 = vmatpush1.bf16.msra.mxu0 0
  %824 = vmatprep.subr.bf16.mxu0 0
  %825 = vmatpush1.bf16.msra.mxu0 0
  %826 = vmatprep.subr.bf16.mxu0 0
  %827 = vmatpush1.bf16.msra.mxu0 0
  %828 = vmatprep.subr.bf16.mxu0 0
  %829 = vmatpush1.bf16.msra.mxu0 0
  %830 = vmatprep.subr.bf16.mxu0 0
  %831 = vmatpush1.bf16.msra.mxu0 0
  %832 = vmatprep.subr.bf16.mxu0 0
  %833 = vmatpush1.bf16.msra.mxu0 0
  %834 = vmatprep.mubr.bf16.mxu0 0
  %835 = vmatmul.mubr.bf16.gmra.mrb[0].mxu0 %v664
  %v836 = vpop.f32.mrb[0].mxu0
  %v837 = vadd.f32 %v748, %v836
  %v838 = vpop.f32.mrb[0].mxu0
  %v839 = vpop.f32.mrb[0].mxu0
  %v840 = vadd.f32 %v751, %v839
  %v841 = vpop.f32.mrb[0].mxu0
  %842 = vdwg.mxu0
  %v844 = vlaneseq
  %v845 = vshrl.u32 %v844, 7
  %v846 = vsub.s32 0, %v845
  %v847 = vrot.slane %v622, %v846
  %v849 = vadd.f32 %v837, %v847
  %v850 = vadd.f32 %v840, %v847
  %v851 = vmax.f32 %v849, 0.0
  %v852 = vmax.f32 %v850, 0.0
  %v853 = vpack.c.bf16 %v852, %v851
  %854 = vst [vmem:[#allocation2] sm:$0xff] %v853
  %v855 = vld [vmem:[#allocation2] sm:$0xff]
  %s856 = scalar_lea.vmem %s5, 128
  %v857 = vld [vmem:[%s856] sm:$0xf]
  %v858 = vld [vmem:[%s856 + $0x4] sm:$0xf]
  %v859 = vld [vmem:[%s856 + $0x8] sm:$0xf]
  %v860 = vld [vmem:[%s856 + $0xc] sm:$0xf]
  %v861 = vld [vmem:[%s856 + $0x10] sm:$0xf]
  %v862 = vld [vmem:[%s856 + $0x14] sm:$0xf]
  %v863 = vld [vmem:[%s856 + $0x18] sm:$0xf]
  %v864 = vld [vmem:[%s856 + $0x1c] sm:$0xf]
  %v865 = vld [vmem:[%s856 + $0x20] sm:$0xf]
  %v866 = vld [vmem:[%s856 + $0x24] sm:$0xf]
  %v867 = vld [vmem:[%s856 + $0x28] sm:$0xf]
  %v868 = vld [vmem:[%s856 + $0x2c] sm:$0xf]
  %v869 = vld [vmem:[%s856 + $0x30] sm:$0xf]
  %v870 = vld [vmem:[%s856 + $0x34] sm:$0xf]
  %v871 = vld [vmem:[%s856 + $0x38] sm:$0xf]
  %v872 = vld [vmem:[%s856 + $0x3c] sm:$0xf]
  %s873 = scalar_lea.vmem %s6, 128
  %v874 = vld [vmem:[%s873] sm:$0xf]
  %v875 = vld [vmem:[%s873 + $0x4] sm:$0xf]
  %v876 = vld [vmem:[%s873 + $0x8] sm:$0xf]
  %v877 = vld [vmem:[%s873 + $0xc] sm:$0xf]
  %v878 = vld [vmem:[%s873 + $0x10] sm:$0xf]
  %v879 = vld [vmem:[%s873 + $0x14] sm:$0xf]
  %v880 = vld [vmem:[%s873 + $0x18] sm:$0xf]
  %v881 = vld [vmem:[%s873 + $0x1c] sm:$0xf]
  %v882 = vld [vmem:[%s873 + $0x20] sm:$0xf]
  %v883 = vld [vmem:[%s873 + $0x24] sm:$0xf]
  %v884 = vld [vmem:[%s873 + $0x28] sm:$0xf]
  %v885 = vld [vmem:[%s873 + $0x2c] sm:$0xf]
  %v886 = vld [vmem:[%s873 + $0x30] sm:$0xf]
  %v887 = vld [vmem:[%s873 + $0x34] sm:$0xf]
  %v888 = vld [vmem:[%s873 + $0x38] sm:$0xf]
  %v889 = vld [vmem:[%s873 + $0x3c] sm:$0xf]
  %s890 = scalar_lea.vmem %s7, 2
  %v891 = vld [vmem:[%s890] sm:$0x1]
  %892 = vmatprep.subr.bf16.mxu0 0
  %893 = vmatpush1.bf16.msra.mxu0 %v855
  %894 = vmatprep.subr.bf16.mxu0 0
  %895 = vmatpush1.bf16.msra.mxu0 0
  %896 = vmatprep.subr.bf16.mxu0 0
  %897 = vmatpush1.bf16.msra.mxu0 0
  %898 = vmatprep.subr.bf16.mxu0 0
  %899 = vmatpush1.bf16.msra.mxu0 0
  %900 = vmatprep.subr.bf16.mxu0 0
  %901 = vmatpush1.bf16.msra.mxu0 0
  %902 = vmatprep.subr.bf16.mxu0 0
  %903 = vmatpush1.bf16.msra.mxu0 0
  %904 = vmatprep.subr.bf16.mxu0 0
  %905 = vmatpush1.bf16.msra.mxu0 0
  %906 = vmatprep.subr.bf16.mxu0 0
  %907 = vmatpush1.bf16.msra.mxu0 0
  %908 = vmatprep.subr.bf16.mxu0 0
  %909 = vmatpush1.bf16.msra.mxu0 0
  %910 = vmatprep.subr.bf16.mxu0 0
  %911 = vmatpush1.bf16.msra.mxu0 0
  %912 = vmatprep.subr.bf16.mxu0 0
  %913 = vmatpush1.bf16.msra.mxu0 0
  %914 = vmatprep.subr.bf16.mxu0 0
  %915 = vmatpush1.bf16.msra.mxu0 0
  %916 = vmatprep.subr.bf16.mxu0 0
  %917 = vmatpush1.bf16.msra.mxu0 0
  %918 = vmatprep.subr.bf16.mxu0 0
  %919 = vmatpush1.bf16.msra.mxu0 0
  %920 = vmatprep.subr.bf16.mxu0 0
  %921 = vmatpush1.bf16.msra.mxu0 0
  %922 = vmatprep.subr.bf16.mxu0 0
  %923 = vmatpush1.bf16.msra.mxu0 0
  %924 = vmatprep.mubr.bf16.mxu0 0
  %925 = vmatmul.mubr.bf16.gmra.mrb[0].mxu0 %v86
  %v926 = vpop.f32.mrb[0].mxu0
  %v927 = vadd.f32 0.0, %v926
  %v928 = vpop.f32.mrb[0].mxu0
  %v929 = vpop.f32.mrb[0].mxu0
  %v930 = vadd.f32 0.0, %v929
  %v931 = vpop.f32.mrb[0].mxu0
  %932 = vdwg.mxu0
  %v933 = vpack.c.bf16 %v930, %v927
  %v950 = vunpack.c.l.b16 %v874
  %v951 = vunpack.c.l.b16 %v875
  %v952 = vunpack.c.l.b16 %v876
  %v953 = vunpack.c.l.b16 %v877
  %v954 = vunpack.c.l.b16 %v878
  %v955 = vunpack.c.l.b16 %v879
  %v956 = vunpack.c.l.b16 %v880
  %v957 = vunpack.c.l.b16 %v881
  %v958 = vunpack.c.l.b16 %v882
  %v959 = vunpack.c.l.b16 %v883
  %v960 = vunpack.c.l.b16 %v884
  %v961 = vunpack.c.l.b16 %v885
  %v962 = vunpack.c.l.b16 %v886
  %v963 = vunpack.c.l.b16 %v887
  %v964 = vunpack.c.l.b16 %v888
  %v965 = vunpack.c.l.b16 %v889
  %v966 = vpack.c.b16 %v951, %v950
  %v967 = vpack.c.b16 %v953, %v952
  %v968 = vpack.c.b16 %v955, %v954
  %v969 = vpack.c.b16 %v957, %v956
  %v970 = vpack.c.b16 %v959, %v958
  %v971 = vpack.c.b16 %v961, %v960
  %v972 = vpack.c.b16 %v963, %v962
  %v973 = vpack.c.b16 %v965, %v964
  %982 = vmatprep.subr.bf16.mxu0 0
  %983 = vmatpush1.bf16.msra.mxu0 %v966
  %984 = vmatprep.subr.bf16.mxu0 0
  %985 = vmatpush1.bf16.msra.mxu0 %v967
  %986 = vmatprep.subr.bf16.mxu0 0
  %987 = vmatpush1.bf16.msra.mxu0 %v968
  %988 = vmatprep.subr.bf16.mxu0 0
  %989 = vmatpush1.bf16.msra.mxu0 %v969
  %990 = vmatprep.subr.bf16.mxu0 0
  %991 = vmatpush1.bf16.msra.mxu0 %v970
  %992 = vmatprep.subr.bf16.mxu0 0
  %993 = vmatpush1.bf16.msra.mxu0 %v971
  %994 = vmatprep.subr.bf16.mxu0 0
  %995 = vmatpush1.bf16.msra.mxu0 %v972
  %996 = vmatprep.subr.bf16.mxu0 0
  %997 = vmatpush1.bf16.msra.mxu0 %v973
  %998 = vmatprep.subr.bf16.mxu0 0
  %999 = vmatpush1.bf16.msra.mxu0 0
  %1000 = vmatprep.subr.bf16.mxu0 0
  %1001 = vmatpush1.bf16.msra.mxu0 0
  %1002 = vmatprep.subr.bf16.mxu0 0
  %1003 = vmatpush1.bf16.msra.mxu0 0
  %1004 = vmatprep.subr.bf16.mxu0 0
  %1005 = vmatpush1.bf16.msra.mxu0 0
  %1006 = vmatprep.subr.bf16.mxu0 0
  %1007 = vmatpush1.bf16.msra.mxu0 0
  %1008 = vmatprep.subr.bf16.mxu0 0
  %1009 = vmatpush1.bf16.msra.mxu0 0
  %1010 = vmatprep.subr.bf16.mxu0 0
  %1011 = vmatpush1.bf16.msra.mxu0 0
  %1012 = vmatprep.subr.bf16.mxu0 0
  %1013 = vmatpush1.bf16.msra.mxu0 0
  %1014 = vmatprep.mubr.bf16.mxu0 0
  %1015 = vmatmul.mubr.bf16.gmra.mrb[0].mxu0 %v855
  %v1016 = vpop.f32.mrb[0].mxu0
  %v1017 = vadd.f32 0.0, %v1016
  %v1018 = vpop.f32.mrb[0].mxu0
  %v1019 = vpop.f32.mrb[0].mxu0
  %v1020 = vadd.f32 0.0, %v1019
  %v1021 = vpop.f32.mrb[0].mxu0
  %1022 = vdwg.mxu0
  %v1039 = vunpack.c.l.b16 %v857
  %v1040 = vunpack.c.l.b16 %v858
  %v1041 = vunpack.c.l.b16 %v859
  %v1042 = vunpack.c.l.b16 %v860
  %v1043 = vunpack.c.l.b16 %v861
  %v1044 = vunpack.c.l.b16 %v862
  %v1045 = vunpack.c.l.b16 %v863
  %v1046 = vunpack.c.l.b16 %v864
  %v1047 = vunpack.c.l.b16 %v865
  %v1048 = vunpack.c.l.b16 %v866
  %v1049 = vunpack.c.l.b16 %v867
  %v1050 = vunpack.c.l.b16 %v868
  %v1051 = vunpack.c.l.b16 %v869
  %v1052 = vunpack.c.l.b16 %v870
  %v1053 = vunpack.c.l.b16 %v871
  %v1054 = vunpack.c.l.b16 %v872
  %v1055 = vpack.c.b16 %v1040, %v1039
  %v1056 = vpack.c.b16 %v1042, %v1041
  %v1057 = vpack.c.b16 %v1044, %v1043
  %v1058 = vpack.c.b16 %v1046, %v1045
  %v1059 = vpack.c.b16 %v1048, %v1047
  %v1060 = vpack.c.b16 %v1050, %v1049
  %v1061 = vpack.c.b16 %v1052, %v1051
  %v1062 = vpack.c.b16 %v1054, %v1053
  %1071 = vmatprep.subr.bf16.mxu0 0
  %1072 = vmatpush1.bf16.msra.mxu0 %v1055
  %1073 = vmatprep.subr.bf16.mxu0 0
  %1074 = vmatpush1.bf16.msra.mxu0 %v1056
  %1075 = vmatprep.subr.bf16.mxu0 0
  %1076 = vmatpush1.bf16.msra.mxu0 %v1057
  %1077 = vmatprep.subr.bf16.mxu0 0
  %1078 = vmatpush1.bf16.msra.mxu0 %v1058
  %1079 = vmatprep.subr.bf16.mxu0 0
  %1080 = vmatpush1.bf16.msra.mxu0 %v1059
  %1081 = vmatprep.subr.bf16.mxu0 0
  %1082 = vmatpush1.bf16.msra.mxu0 %v1060
  %1083 = vmatprep.subr.bf16.mxu0 0
  %1084 = vmatpush1.bf16.msra.mxu0 %v1061
  %1085 = vmatprep.subr.bf16.mxu0 0
  %1086 = vmatpush1.bf16.msra.mxu0 %v1062
  %1087 = vmatprep.subr.bf16.mxu0 0
  %1088 = vmatpush1.bf16.msra.mxu0 0
  %1089 = vmatprep.subr.bf16.mxu0 0
  %1090 = vmatpush1.bf16.msra.mxu0 0
  %1091 = vmatprep.subr.bf16.mxu0 0
  %1092 = vmatpush1.bf16.msra.mxu0 0
  %1093 = vmatprep.subr.bf16.mxu0 0
  %1094 = vmatpush1.bf16.msra.mxu0 0
  %1095 = vmatprep.subr.bf16.mxu0 0
  %1096 = vmatpush1.bf16.msra.mxu0 0
  %1097 = vmatprep.subr.bf16.mxu0 0
  %1098 = vmatpush1.bf16.msra.mxu0 0
  %1099 = vmatprep.subr.bf16.mxu0 0
  %1100 = vmatpush1.bf16.msra.mxu0 0
  %1101 = vmatprep.subr.bf16.mxu0 0
  %1102 = vmatpush1.bf16.msra.mxu0 0
  %1103 = vmatprep.mubr.bf16.mxu0 0
  %1104 = vmatmul.mubr.bf16.gmra.mrb[0].mxu0 %v933
  %v1105 = vpop.f32.mrb[0].mxu0
  %v1106 = vadd.f32 %v1017, %v1105
  %v1107 = vpop.f32.mrb[0].mxu0
  %v1108 = vpop.f32.mrb[0].mxu0
  %v1109 = vadd.f32 %v1020, %v1108
  %v1110 = vpop.f32.mrb[0].mxu0
  %1111 = vdwg.mxu0
  %v1113 = vlaneseq
  %v1114 = vshrl.u32 %v1113, 7
  %v1115 = vsub.s32 0, %v1114
  %v1116 = vrot.slane %v891, %v1115
  %v1118 = vadd.f32 %v1106, %v1116
  %v1119 = vadd.f32 %v1109, %v1116
  %v1120 = vmax.f32 %v1118, 0.0
  %v1121 = vmax.f32 %v1119, 0.0
  %v1122 = vpack.c.bf16 %v1121, %v1120
  %1123 = vst [vmem:[#allocation2] sm:$0xff] %v1122
  %v1124 = vld [vmem:[#allocation2] sm:$0xff]
  %s1125 = scalar_lea.vmem %s5, 192
  %v1126 = vld [vmem:[%s1125] sm:$0xf]
  %v1127 = vld [vmem:[%s1125 + $0x4] sm:$0xf]
  %v1128 = vld [vmem:[%s1125 + $0x8] sm:$0xf]
  %v1129 = vld [vmem:[%s1125 + $0xc] sm:$0xf]
  %v1130 = vld [vmem:[%s1125 + $0x10] sm:$0xf]
  %v1131 = vld [vmem:[%s1125 + $0x14] sm:$0xf]
  %v1132 = vld [vmem:[%s1125 + $0x18] sm:$0xf]
  %v1133 = vld [vmem:[%s1125 + $0x1c] sm:$0xf]
  %v1134 = vld [vmem:[%s1125 + $0x20] sm:$0xf]
  %v1135 = vld [vmem:[%s1125 + $0x24] sm:$0xf]
  %v1136 = vld [vmem:[%s1125 + $0x28] sm:$0xf]
  %v1137 = vld [vmem:[%s1125 + $0x2c] sm:$0xf]
  %v1138 = vld [vmem:[%s1125 + $0x30] sm:$0xf]
  %v1139 = vld [vmem:[%s1125 + $0x34] sm:$0xf]
  %v1140 = vld [vmem:[%s1125 + $0x38] sm:$0xf]
  %v1141 = vld [vmem:[%s1125 + $0x3c] sm:$0xf]
  %s1142 = scalar_lea.vmem %s6, 192
  %v1143 = vld [vmem:[%s1142] sm:$0xf]
  %v1144 = vld [vmem:[%s1142 + $0x4] sm:$0xf]
  %v1145 = vld [vmem:[%s1142 + $0x8] sm:$0xf]
  %v1146 = vld [vmem:[%s1142 + $0xc] sm:$0xf]
  %v1147 = vld [vmem:[%s1142 + $0x10] sm:$0xf]
  %v1148 = vld [vmem:[%s1142 + $0x14] sm:$0xf]
  %v1149 = vld [vmem:[%s1142 + $0x18] sm:$0xf]
  %v1150 = vld [vmem:[%s1142 + $0x1c] sm:$0xf]
  %v1151 = vld [vmem:[%s1142 + $0x20] sm:$0xf]
  %v1152 = vld [vmem:[%s1142 + $0x24] sm:$0xf]
  %v1153 = vld [vmem:[%s1142 + $0x28] sm:$0xf]
  %v1154 = vld [vmem:[%s1142 + $0x2c] sm:$0xf]
  %v1155 = vld [vmem:[%s1142 + $0x30] sm:$0xf]
  %v1156 = vld [vmem:[%s1142 + $0x34] sm:$0xf]
  %v1157 = vld [vmem:[%s1142 + $0x38] sm:$0xf]
  %v1158 = vld [vmem:[%s1142 + $0x3c] sm:$0xf]
  %s1159 = scalar_lea.vmem %s7, 3
  %v1160 = vld [vmem:[%s1159] sm:$0x1]
  %1161 = vmatprep.subr.bf16.mxu0 0
  %1162 = vmatpush1.bf16.msra.mxu0 %v1124
  %1163 = vmatprep.subr.bf16.mxu0 0
  %1164 = vmatpush1.bf16.msra.mxu0 0
  %1165 = vmatprep.subr.bf16.mxu0 0
  %1166 = vmatpush1.bf16.msra.mxu0 0
  %1167 = vmatprep.subr.bf16.mxu0 0
  %1168 = vmatpush1.bf16.msra.mxu0 0
  %1169 = vmatprep.subr.bf16.mxu0 0
  %1170 = vmatpush1.bf16.msra.mxu0 0
  %1171 = vmatprep.subr.bf16.mxu0 0
  %1172 = vmatpush1.bf16.msra.mxu0 0
  %1173 = vmatprep.subr.bf16.mxu0 0
  %1174 = vmatpush1.bf16.msra.mxu0 0
  %1175 = vmatprep.subr.bf16.mxu0 0
  %1176 = vmatpush1.bf16.msra.mxu0 0
  %1177 = vmatprep.subr.bf16.mxu0 0
  %1178 = vmatpush1.bf16.msra.mxu0 0
  %1179 = vmatprep.subr.bf16.mxu0 0
  %1180 = vmatpush1.bf16.msra.mxu0 0
  %1181 = vmatprep.subr.bf16.mxu0 0
  %1182 = vmatpush1.bf16.msra.mxu0 0
  %1183 = vmatprep.subr.bf16.mxu0 0
  %1184 = vmatpush1.bf16.msra.mxu0 0
  %1185 = vmatprep.subr.bf16.mxu0 0
  %1186 = vmatpush1.bf16.msra.mxu0 0
  %1187 = vmatprep.subr.bf16.mxu0 0
  %1188 = vmatpush1.bf16.msra.mxu0 0
  %1189 = vmatprep.subr.bf16.mxu0 0
  %1190 = vmatpush1.bf16.msra.mxu0 0
  %1191 = vmatprep.subr.bf16.mxu0 0
  %1192 = vmatpush1.bf16.msra.mxu0 0
  %1193 = vmatprep.mubr.bf16.mxu0 0
  %1194 = vmatmul.mubr.bf16.gmra.mrb[0].mxu0 %v86
  %v1195 = vpop.f32.mrb[0].mxu0
  %v1196 = vadd.f32 0.0, %v1195
  %v1197 = vpop.f32.mrb[0].mxu0
  %v1198 = vpop.f32.mrb[0].mxu0
  %v1199 = vadd.f32 0.0, %v1198
  %v1200 = vpop.f32.mrb[0].mxu0
  %1201 = vdwg.mxu0
  %v1202 = vpack.c.bf16 %v1199, %v1196
  %v1219 = vunpack.c.l.b16 %v1143
  %v1220 = vunpack.c.l.b16 %v1144
  %v1221 = vunpack.c.l.b16 %v1145
  %v1222 = vunpack.c.l.b16 %v1146
  %v1223 = vunpack.c.l.b16 %v1147
  %v1224 = vunpack.c.l.b16 %v1148
  %v1225 = vunpack.c.l.b16 %v1149
  %v1226 = vunpack.c.l.b16 %v1150
  %v1227 = vunpack.c.l.b16 %v1151
  %v1228 = vunpack.c.l.b16 %v1152
  %v1229 = vunpack.c.l.b16 %v1153
  %v1230 = vunpack.c.l.b16 %v1154
  %v1231 = vunpack.c.l.b16 %v1155
  %v1232 = vunpack.c.l.b16 %v1156
  %v1233 = vunpack.c.l.b16 %v1157
  %v1234 = vunpack.c.l.b16 %v1158
  %v1235 = vpack.c.b16 %v1220, %v1219
  %v1236 = vpack.c.b16 %v1222, %v1221
  %v1237 = vpack.c.b16 %v1224, %v1223
  %v1238 = vpack.c.b16 %v1226, %v1225
  %v1239 = vpack.c.b16 %v1228, %v1227
  %v1240 = vpack.c.b16 %v1230, %v1229
  %v1241 = vpack.c.b16 %v1232, %v1231
  %v1242 = vpack.c.b16 %v1234, %v1233
  %1251 = vmatprep.subr.bf16.mxu0 0
  %1252 = vmatpush1.bf16.msra.mxu0 %v1235
  %1253 = vmatprep.subr.bf16.mxu0 0
  %1254 = vmatpush1.bf16.msra.mxu0 %v1236
  %1255 = vmatprep.subr.bf16.mxu0 0
  %1256 = vmatpush1.bf16.msra.mxu0 %v1237
  %1257 = vmatprep.subr.bf16.mxu0 0
  %1258 = vmatpush1.bf16.msra.mxu0 %v1238
  %1259 = vmatprep.subr.bf16.mxu0 0
  %1260 = vmatpush1.bf16.msra.mxu0 %v1239
  %1261 = vmatprep.subr.bf16.mxu0 0
  %1262 = vmatpush1.bf16.msra.mxu0 %v1240
  %1263 = vmatprep.subr.bf16.mxu0 0
  %1264 = vmatpush1.bf16.msra.mxu0 %v1241
  %1265 = vmatprep.subr.bf16.mxu0 0
  %1266 = vmatpush1.bf16.msra.mxu0 %v1242
  %1267 = vmatprep.subr.bf16.mxu0 0
  %1268 = vmatpush1.bf16.msra.mxu0 0
  %1269 = vmatprep.subr.bf16.mxu0 0
  %1270 = vmatpush1.bf16.msra.mxu0 0
  %1271 = vmatprep.subr.bf16.mxu0 0
  %1272 = vmatpush1.bf16.msra.mxu0 0
  %1273 = vmatprep.subr.bf16.mxu0 0
  %1274 = vmatpush1.bf16.msra.mxu0 0
  %1275 = vmatprep.subr.bf16.mxu0 0
  %1276 = vmatpush1.bf16.msra.mxu0 0
  %1277 = vmatprep.subr.bf16.mxu0 0
  %1278 = vmatpush1.bf16.msra.mxu0 0
  %1279 = vmatprep.subr.bf16.mxu0 0
  %1280 = vmatpush1.bf16.msra.mxu0 0
  %1281 = vmatprep.subr.bf16.mxu0 0
  %1282 = vmatpush1.bf16.msra.mxu0 0
  %1283 = vmatprep.mubr.bf16.mxu0 0
  %1284 = vmatmul.mubr.bf16.gmra.mrb[0].mxu0 %v1124
  %v1285 = vpop.f32.mrb[0].mxu0
  %v1286 = vadd.f32 0.0, %v1285
  %v1287 = vpop.f32.mrb[0].mxu0
  %v1288 = vpop.f32.mrb[0].mxu0
  %v1289 = vadd.f32 0.0, %v1288
  %v1290 = vpop.f32.mrb[0].mxu0
  %1291 = vdwg.mxu0
  %v1308 = vunpack.c.l.b16 %v1126
  %v1309 = vunpack.c.l.b16 %v1127
  %v1310 = vunpack.c.l.b16 %v1128
  %v1311 = vunpack.c.l.b16 %v1129
  %v1312 = vunpack.c.l.b16 %v1130
  %v1313 = vunpack.c.l.b16 %v1131
  %v1314 = vunpack.c.l.b16 %v1132
  %v1315 = vunpack.c.l.b16 %v1133
  %v1316 = vunpack.c.l.b16 %v1134
  %v1317 = vunpack.c.l.b16 %v1135
  %v1318 = vunpack.c.l.b16 %v1136
  %v1319 = vunpack.c.l.b16 %v1137
  %v1320 = vunpack.c.l.b16 %v1138
  %v1321 = vunpack.c.l.b16 %v1139
  %v1322 = vunpack.c.l.b16 %v1140
  %v1323 = vunpack.c.l.b16 %v1141
  %v1324 = vpack.c.b16 %v1309, %v1308
  %v1325 = vpack.c.b16 %v1311, %v1310
  %v1326 = vpack.c.b16 %v1313, %v1312
  %v1327 = vpack.c.b16 %v1315, %v1314
  %v1328 = vpack.c.b16 %v1317, %v1316
  %v1329 = vpack.c.b16 %v1319, %v1318
  %v1330 = vpack.c.b16 %v1321, %v1320
  %v1331 = vpack.c.b16 %v1323, %v1322
  %1340 = vmatprep.subr.bf16.mxu0 0
  %1341 = vmatpush1.bf16.msra.mxu0 %v1324
  %1342 = vmatprep.subr.bf16.mxu0 0
  %1343 = vmatpush1.bf16.msra.mxu0 %v1325
  %1344 = vmatprep.subr.bf16.mxu0 0
  %1345 = vmatpush1.bf16.msra.mxu0 %v1326
  %1346 = vmatprep.subr.bf16.mxu0 0
  %1347 = vmatpush1.bf16.msra.mxu0 %v1327
  %1348 = vmatprep.subr.bf16.mxu0 0
  %1349 = vmatpush1.bf16.msra.mxu0 %v1328
  %1350 = vmatprep.subr.bf16.mxu0 0
  %1351 = vmatpush1.bf16.msra.mxu0 %v1329
  %1352 = vmatprep.subr.bf16.mxu0 0
  %1353 = vmatpush1.bf16.msra.mxu0 %v1330
  %1354 = vmatprep.subr.bf16.mxu0 0
  %1355 = vmatpush1.bf16.msra.mxu0 %v1331
  %1356 = vmatprep.subr.bf16.mxu0 0
  %1357 = vmatpush1.bf16.msra.mxu0 0
  %1358 = vmatprep.subr.bf16.mxu0 0
  %1359 = vmatpush1.bf16.msra.mxu0 0
  %1360 = vmatprep.subr.bf16.mxu0 0
  %1361 = vmatpush1.bf16.msra.mxu0 0
  %1362 = vmatprep.subr.bf16.mxu0 0
  %1363 = vmatpush1.bf16.msra.mxu0 0
  %1364 = vmatprep.subr.bf16.mxu0 0
  %1365 = vmatpush1.bf16.msra.mxu0 0
  %1366 = vmatprep.subr.bf16.mxu0 0
  %1367 = vmatpush1.bf16.msra.mxu0 0
  %1368 = vmatprep.subr.bf16.mxu0 0
  %1369 = vmatpush1.bf16.msra.mxu0 0
  %1370 = vmatprep.subr.bf16.mxu0 0
  %1371 = vmatpush1.bf16.msra.mxu0 0
  %1372 = vmatprep.mubr.bf16.mxu0 0
  %1373 = vmatmul.mubr.bf16.gmra.mrb[0].mxu0 %v1202
  %v1374 = vpop.f32.mrb[0].mxu0
  %v1375 = vadd.f32 %v1286, %v1374
  %v1376 = vpop.f32.mrb[0].mxu0
  %v1377 = vpop.f32.mrb[0].mxu0
  %v1378 = vadd.f32 %v1289, %v1377
  %v1379 = vpop.f32.mrb[0].mxu0
  %1380 = vdwg.mxu0
  %v1382 = vlaneseq
  %v1383 = vshrl.u32 %v1382, 7
  %v1384 = vsub.s32 0, %v1383
  %v1385 = vrot.slane %v1160, %v1384
  %v1387 = vadd.f32 %v1375, %v1385
  %v1388 = vadd.f32 %v1378, %v1385
  %v1389 = vmax.f32 %v1387, 0.0
  %v1390 = vmax.f32 %v1388, 0.0
  %v1391 = vpack.c.bf16 %v1390, %v1389
  %1392 = vst [vmem:[#allocation2] sm:$0xff] %v1391
  %v1393 = vld [vmem:[#allocation2] sm:$0xff]
  %s1394 = scalar_lea.vmem %s5, 256
  %v1395 = vld [vmem:[%s1394] sm:$0xf]
  %v1396 = vld [vmem:[%s1394 + $0x4] sm:$0xf]
  %v1397 = vld [vmem:[%s1394 + $0x8] sm:$0xf]
  %v1398 = vld [vmem:[%s1394 + $0xc] sm:$0xf]
  %v1399 = vld [vmem:[%s1394 + $0x10] sm:$0xf]
  %v1400 = vld [vmem:[%s1394 + $0x14] sm:$0xf]
  %v1401 = vld [vmem:[%s1394 + $0x18] sm:$0xf]
  %v1402 = vld [vmem:[%s1394 + $0x1c] sm:$0xf]
  %v1403 = vld [vmem:[%s1394 + $0x20] sm:$0xf]
  %v1404 = vld [vmem:[%s1394 + $0x24] sm:$0xf]
  %v1405 = vld [vmem:[%s1394 + $0x28] sm:$0xf]
  %v1406 = vld [vmem:[%s1394 + $0x2c] sm:$0xf]
  %v1407 = vld [vmem:[%s1394 + $0x30] sm:$0xf]
  %v1408 = vld [vmem:[%s1394 + $0x34] sm:$0xf]
  %v1409 = vld [vmem:[%s1394 + $0x38] sm:$0xf]
  %v1410 = vld [vmem:[%s1394 + $0x3c] sm:$0xf]
  %s1411 = scalar_lea.vmem %s6, 256
  %v1412 = vld [vmem:[%s1411] sm:$0xf]
  %v1413 = vld [vmem:[%s1411 + $0x4] sm:$0xf]
  %v1414 = vld [vmem:[%s1411 + $0x8] sm:$0xf]
  %v1415 = vld [vmem:[%s1411 + $0xc] sm:$0xf]
  %v1416 = vld [vmem:[%s1411 + $0x10] sm:$0xf]
  %v1417 = vld [vmem:[%s1411 + $0x14] sm:$0xf]
  %v1418 = vld [vmem:[%s1411 + $0x18] sm:$0xf]
  %v1419 = vld [vmem:[%s1411 + $0x1c] sm:$0xf]
  %v1420 = vld [vmem:[%s1411 + $0x20] sm:$0xf]
  %v1421 = vld [vmem:[%s1411 + $0x24] sm:$0xf]
  %v1422 = vld [vmem:[%s1411 + $0x28] sm:$0xf]
  %v1423 = vld [vmem:[%s1411 + $0x2c] sm:$0xf]
  %v1424 = vld [vmem:[%s1411 + $0x30] sm:$0xf]
  %v1425 = vld [vmem:[%s1411 + $0x34] sm:$0xf]
  %v1426 = vld [vmem:[%s1411 + $0x38] sm:$0xf]
  %v1427 = vld [vmem:[%s1411 + $0x3c] sm:$0xf]
  %s1428 = scalar_lea.vmem %s7, 4
  %v1429 = vld [vmem:[%s1428] sm:$0x1]
  %1430 = vmatprep.subr.bf16.mxu0 0
  %1431 = vmatpush1.bf16.msra.mxu0 %v1393
  %1432 = vmatprep.subr.bf16.mxu0 0
  %1433 = vmatpush1.bf16.msra.mxu0 0
  %1434 = vmatprep.subr.bf16.mxu0 0
  %1435 = vmatpush1.bf16.msra.mxu0 0
  %1436 = vmatprep.subr.bf16.mxu0 0
  %1437 = vmatpush1.bf16.msra.mxu0 0
  %1438 = vmatprep.subr.bf16.mxu0 0
  %1439 = vmatpush1.bf16.msra.mxu0 0
  %1440 = vmatprep.subr.bf16.mxu0 0
  %1441 = vmatpush1.bf16.msra.mxu0 0
  %1442 = vmatprep.subr.bf16.mxu0 0
  %1443 = vmatpush1.bf16.msra.mxu0 0
  %1444 = vmatprep.subr.bf16.mxu0 0
  %1445 = vmatpush1.bf16.msra.mxu0 0
  %1446 = vmatprep.subr.bf16.mxu0 0
  %1447 = vmatpush1.bf16.msra.mxu0 0
  %1448 = vmatprep.subr.bf16.mxu0 0
  %1449 = vmatpush1.bf16.msra.mxu0 0
  %1450 = vmatprep.subr.bf16.mxu0 0
  %1451 = vmatpush1.bf16.msra.mxu0 0
  %1452 = vmatprep.subr.bf16.mxu0 0
  %1453 = vmatpush1.bf16.msra.mxu0 0
  %1454 = vmatprep.subr.bf16.mxu0 0
  %1455 = vmatpush1.bf16.msra.mxu0 0
  %1456 = vmatprep.subr.bf16.mxu0 0
  %1457 = vmatpush1.bf16.msra.mxu0 0
  %1458 = vmatprep.subr.bf16.mxu0 0
  %1459 = vmatpush1.bf16.msra.mxu0 0
  %1460 = vmatprep.subr.bf16.mxu0 0
  %1461 = vmatpush1.bf16.msra.mxu0 0
  %1462 = vmatprep.mubr.bf16.mxu0 0
  %1463 = vmatmul.mubr.bf16.gmra.mrb[0].mxu0 %v86
  %v1464 = vpop.f32.mrb[0].mxu0
  %v1465 = vadd.f32 0.0, %v1464
  %v1466 = vpop.f32.mrb[0].mxu0
  %v1467 = vpop.f32.mrb[0].mxu0
  %v1468 = vadd.f32 0.0, %v1467
  %v1469 = vpop.f32.mrb[0].mxu0
  %1470 = vdwg.mxu0
  %v1471 = vpack.c.bf16 %v1468, %v1465
  %v1488 = vunpack.c.l.b16 %v1412
  %v1489 = vunpack.c.l.b16 %v1413
  %v1490 = vunpack.c.l.b16 %v1414
  %v1491 = vunpack.c.l.b16 %v1415
  %v1492 = vunpack.c.l.b16 %v1416
  %v1493 = vunpack.c.l.b16 %v1417
  %v1494 = vunpack.c.l.b16 %v1418
  %v1495 = vunpack.c.l.b16 %v1419
  %v1496 = vunpack.c.l.b16 %v1420
  %v1497 = vunpack.c.l.b16 %v1421
  %v1498 = vunpack.c.l.b16 %v1422
  %v1499 = vunpack.c.l.b16 %v1423
  %v1500 = vunpack.c.l.b16 %v1424
  %v1501 = vunpack.c.l.b16 %v1425
  %v1502 = vunpack.c.l.b16 %v1426
  %v1503 = vunpack.c.l.b16 %v1427
  %v1504 = vpack.c.b16 %v1489, %v1488
  %v1505 = vpack.c.b16 %v1491, %v1490
  %v1506 = vpack.c.b16 %v1493, %v1492
  %v1507 = vpack.c.b16 %v1495, %v1494
  %v1508 = vpack.c.b16 %v1497, %v1496
  %v1509 = vpack.c.b16 %v1499, %v1498
  %v1510 = vpack.c.b16 %v1501, %v1500
  %v1511 = vpack.c.b16 %v1503, %v1502
  %1520 = vmatprep.subr.bf16.mxu0 0
  %1521 = vmatpush1.bf16.msra.mxu0 %v1504
  %1522 = vmatprep.subr.bf16.mxu0 0
  %1523 = vmatpush1.bf16.msra.mxu0 %v1505
  %1524 = vmatprep.subr.bf16.mxu0 0
  %1525 = vmatpush1.bf16.msra.mxu0 %v1506
  %1526 = vmatprep.subr.bf16.mxu0 0
  %1527 = vmatpush1.bf16.msra.mxu0 %v1507
  %1528 = vmatprep.subr.bf16.mxu0 0
  %1529 = vmatpush1.bf16.msra.mxu0 %v1508
  %1530 = vmatprep.subr.bf16.mxu0 0
  %1531 = vmatpush1.bf16.msra.mxu0 %v1509
  %1532 = vmatprep.subr.bf16.mxu0 0
  %1533 = vmatpush1.bf16.msra.mxu0 %v1510
  %1534 = vmatprep.subr.bf16.mxu0 0
  %1535 = vmatpush1.bf16.msra.mxu0 %v1511
  %1536 = vmatprep.subr.bf16.mxu0 0
  %1537 = vmatpush1.bf16.msra.mxu0 0
  %1538 = vmatprep.subr.bf16.mxu0 0
  %1539 = vmatpush1.bf16.msra.mxu0 0
  %1540 = vmatprep.subr.bf16.mxu0 0
  %1541 = vmatpush1.bf16.msra.mxu0 0
  %1542 = vmatprep.subr.bf16.mxu0 0
  %1543 = vmatpush1.bf16.msra.mxu0 0
  %1544 = vmatprep.subr.bf16.mxu0 0
  %1545 = vmatpush1.bf16.msra.mxu0 0
  %1546 = vmatprep.subr.bf16.mxu0 0
  %1547 = vmatpush1.bf16.msra.mxu0 0
  %1548 = vmatprep.subr.bf16.mxu0 0
  %1549 = vmatpush1.bf16.msra.mxu0 0
  %1550 = vmatprep.subr.bf16.mxu0 0
  %1551 = vmatpush1.bf16.msra.mxu0 0
  %1552 = vmatprep.mubr.bf16.mxu0 0
  %1553 = vmatmul.mubr.bf16.gmra.mrb[0].mxu0 %v1393
  %v1554 = vpop.f32.mrb[0].mxu0
  %v1555 = vadd.f32 0.0, %v1554
  %v1556 = vpop.f32.mrb[0].mxu0
  %v1557 = vpop.f32.mrb[0].mxu0
  %v1558 = vadd.f32 0.0, %v1557
  %v1559 = vpop.f32.mrb[0].mxu0
  %1560 = vdwg.mxu0
  %v1577 = vunpack.c.l.b16 %v1395
  %v1578 = vunpack.c.l.b16 %v1396
  %v1579 = vunpack.c.l.b16 %v1397
  %v1580 = vunpack.c.l.b16 %v1398
  %v1581 = vunpack.c.l.b16 %v1399
  %v1582 = vunpack.c.l.b16 %v1400
  %v1583 = vunpack.c.l.b16 %v1401
  %v1584 = vunpack.c.l.b16 %v1402
  %v1585 = vunpack.c.l.b16 %v1403
  %v1586 = vunpack.c.l.b16 %v1404
  %v1587 = vunpack.c.l.b16 %v1405
  %v1588 = vunpack.c.l.b16 %v1406
  %v1589 = vunpack.c.l.b16 %v1407
  %v1590 = vunpack.c.l.b16 %v1408
  %v1591 = vunpack.c.l.b16 %v1409
  %v1592 = vunpack.c.l.b16 %v1410
  %v1593 = vpack.c.b16 %v1578, %v1577
  %v1594 = vpack.c.b16 %v1580, %v1579
  %v1595 = vpack.c.b16 %v1582, %v1581
  %v1596 = vpack.c.b16 %v1584, %v1583
  %v1597 = vpack.c.b16 %v1586, %v1585
  %v1598 = vpack.c.b16 %v1588, %v1587
  %v1599 = vpack.c.b16 %v1590, %v1589
  %v1600 = vpack.c.b16 %v1592, %v1591
  %1609 = vmatprep.subr.bf16.mxu0 0
  %1610 = vmatpush1.bf16.msra.mxu0 %v1593
  %1611 = vmatprep.subr.bf16.mxu0 0
  %1612 = vmatpush1.bf16.msra.mxu0 %v1594
  %1613 = vmatprep.subr.bf16.mxu0 0
  %1614 = vmatpush1.bf16.msra.mxu0 %v1595
  %1615 = vmatprep.subr.bf16.mxu0 0
  %1616 = vmatpush1.bf16.msra.mxu0 %v1596
  %1617 = vmatprep.subr.bf16.mxu0 0
  %1618 = vmatpush1.bf16.msra.mxu0 %v1597
  %1619 = vmatprep.subr.bf16.mxu0 0
  %1620 = vmatpush1.bf16.msra.mxu0 %v1598
  %1621 = vmatprep.subr.bf16.mxu0 0
  %1622 = vmatpush1.bf16.msra.mxu0 %v1599
  %1623 = vmatprep.subr.bf16.mxu0 0
  %1624 = vmatpush1.bf16.msra.mxu0 %v1600
  %1625 = vmatprep.subr.bf16.mxu0 0
  %1626 = vmatpush1.bf16.msra.mxu0 0
  %1627 = vmatprep.subr.bf16.mxu0 0
  %1628 = vmatpush1.bf16.msra.mxu0 0
  %1629 = vmatprep.subr.bf16.mxu0 0
  %1630 = vmatpush1.bf16.msra.mxu0 0
  %1631 = vmatprep.subr.bf16.mxu0 0
  %1632 = vmatpush1.bf16.msra.mxu0 0
  %1633 = vmatprep.subr.bf16.mxu0 0
  %1634 = vmatpush1.bf16.msra.mxu0 0
  %1635 = vmatprep.subr.bf16.mxu0 0
  %1636 = vmatpush1.bf16.msra.mxu0 0
  %1637 = vmatprep.subr.bf16.mxu0 0
  %1638 = vmatpush1.bf16.msra.mxu0 0
  %1639 = vmatprep.subr.bf16.mxu0 0
  %1640 = vmatpush1.bf16.msra.mxu0 0
  %1641 = vmatprep.mubr.bf16.mxu0 0
  %1642 = vmatmul.mubr.bf16.gmra.mrb[0].mxu0 %v1471
  %v1643 = vpop.f32.mrb[0].mxu0
  %v1644 = vadd.f32 %v1555, %v1643
  %v1645 = vpop.f32.mrb[0].mxu0
  %v1646 = vpop.f32.mrb[0].mxu0
  %v1647 = vadd.f32 %v1558, %v1646
  %v1648 = vpop.f32.mrb[0].mxu0
  %1649 = vdwg.mxu0
  %v1651 = vlaneseq
  %v1652 = vshrl.u32 %v1651, 7
  %v1653 = vsub.s32 0, %v1652
  %v1654 = vrot.slane %v1429, %v1653
  %v1656 = vadd.f32 %v1644, %v1654
  %v1657 = vadd.f32 %v1647, %v1654
  %v1658 = vmax.f32 %v1656, 0.0
  %v1659 = vmax.f32 %v1657, 0.0
  %v1660 = vpack.c.bf16 %v1659, %v1658
  %1661 = vst [vmem:[#allocation2] sm:$0xff] %v1660
  %v1662 = vld [vmem:[#allocation2] sm:$0xff]
  %v1663 = vld [vmem:[%s8] sm:$0xf]
  %v1664 = vld [vmem:[%s8 + $0x4] sm:$0xf]
  %v1665 = vld [vmem:[%s8 + $0x8] sm:$0xf]
  %v1666 = vld [vmem:[%s8 + $0xc] sm:$0xf]
  %v1667 = vld [vmem:[%s8 + $0x10] sm:$0xf]
  %v1668 = vld [vmem:[%s8 + $0x14] sm:$0xf]
  %v1669 = vld [vmem:[%s8 + $0x18] sm:$0xf]
  %v1670 = vld [vmem:[%s8 + $0x1c] sm:$0xf]
  %v1671 = vld [vmem:[%s8 + $0x20] sm:$0xf]
  %v1672 = vld [vmem:[%s8 + $0x24] sm:$0xf]
  %v1673 = vld [vmem:[%s8 + $0x28] sm:$0xf]
  %v1674 = vld [vmem:[%s8 + $0x2c] sm:$0xf]
  %v1675 = vld [vmem:[%s8 + $0x30] sm:$0xf]
  %v1676 = vld [vmem:[%s8 + $0x34] sm:$0xf]
  %v1677 = vld [vmem:[%s8 + $0x38] sm:$0xf]
  %v1678 = vld [vmem:[%s8 + $0x3c] sm:$0xf]
  %v1679 = vld [vmem:[%s9] sm:$0x1]
  %v1681 = vlaneseq
  %v1682 = vshrl.u32 %v1681, 7
  %v1683 = vsub.s32 0, %v1682
  %v1684 = vrot.slane %v1679, %v1683
  %v1702 = vunpack.c.l.b16 %v1663
  %v1703 = vunpack.c.l.b16 %v1664
  %v1704 = vunpack.c.l.b16 %v1665
  %v1705 = vunpack.c.l.b16 %v1666
  %v1706 = vunpack.c.l.b16 %v1667
  %v1707 = vunpack.c.l.b16 %v1668
  %v1708 = vunpack.c.l.b16 %v1669
  %v1709 = vunpack.c.l.b16 %v1670
  %v1710 = vunpack.c.l.b16 %v1671
  %v1711 = vunpack.c.l.b16 %v1672
  %v1712 = vunpack.c.l.b16 %v1673
  %v1713 = vunpack.c.l.b16 %v1674
  %v1714 = vunpack.c.l.b16 %v1675
  %v1715 = vunpack.c.l.b16 %v1676
  %v1716 = vunpack.c.l.b16 %v1677
  %v1717 = vunpack.c.l.b16 %v1678
  %v1718 = vpack.c.b16 %v1703, %v1702
  %v1719 = vpack.c.b16 %v1705, %v1704
  %v1720 = vpack.c.b16 %v1707, %v1706
  %v1721 = vpack.c.b16 %v1709, %v1708
  %v1722 = vpack.c.b16 %v1711, %v1710
  %v1723 = vpack.c.b16 %v1713, %v1712
  %v1724 = vpack.c.b16 %v1715, %v1714
  %v1725 = vpack.c.b16 %v1717, %v1716
  %1734 = vmatprep.subr.bf16.mxu0 0
  %1735 = vmatpush1.bf16.msra.mxu0 %v1718
  %1736 = vmatprep.subr.bf16.mxu0 0
  %1737 = vmatpush1.bf16.msra.mxu0 %v1719
  %1738 = vmatprep.subr.bf16.mxu0 0
  %1739 = vmatpush1.bf16.msra.mxu0 %v1720
  %1740 = vmatprep.subr.bf16.mxu0 0
  %1741 = vmatpush1.bf16.msra.mxu0 %v1721
  %1742 = vmatprep.subr.bf16.mxu0 0
  %1743 = vmatpush1.bf16.msra.mxu0 %v1722
  %1744 = vmatprep.subr.bf16.mxu0 0
  %1745 = vmatpush1.bf16.msra.mxu0 %v1723
  %1746 = vmatprep.subr.bf16.mxu0 0
  %1747 = vmatpush1.bf16.msra.mxu0 %v1724
  %1748 = vmatprep.subr.bf16.mxu0 0
  %1749 = vmatpush1.bf16.msra.mxu0 %v1725
  %1750 = vmatprep.subr.bf16.mxu0 0
  %1751 = vmatpush1.bf16.msra.mxu0 0
  %1752 = vmatprep.subr.bf16.mxu0 0
  %1753 = vmatpush1.bf16.msra.mxu0 0
  %1754 = vmatprep.subr.bf16.mxu0 0
  %1755 = vmatpush1.bf16.msra.mxu0 0
  %1756 = vmatprep.subr.bf16.mxu0 0
  %1757 = vmatpush1.bf16.msra.mxu0 0
  %1758 = vmatprep.subr.bf16.mxu0 0
  %1759 = vmatpush1.bf16.msra.mxu0 0
  %1760 = vmatprep.subr.bf16.mxu0 0
  %1761 = vmatpush1.bf16.msra.mxu0 0
  %1762 = vmatprep.subr.bf16.mxu0 0
  %1763 = vmatpush1.bf16.msra.mxu0 0
  %1764 = vmatprep.subr.bf16.mxu0 0
  %1765 = vmatpush1.bf16.msra.mxu0 0
  %1766 = vmatprep.mubr.bf16.mxu0 0
  %1767 = vmatmul.mubr.bf16.gmra.mrb[0].mxu0 %v1662
  %v1768 = vpop.f32.mrb[0].mxu0
  %v1769 = vadd.f32 %v1684, %v1768
  %v1770 = vpop.f32.mrb[0].mxu0
  %v1771 = vpop.f32.mrb[0].mxu0
  %v1772 = vadd.f32 %v1684, %v1771
  %v1773 = vpop.f32.mrb[0].mxu0
  %1774 = vdwg.mxu0
  %1775 = vst [vmem:[%s10] sm:$0xff] %v1769
  %1776 = vst [vmem:[%s10 + $0x8] sm:$0xff] %v1772
  // Predicated region
  $region42: #{saliency_gnn_forward.1} parent=0 // pred_check
    _
  $region43: #{saliency_gnn_forward.1} parent=0 // pred_check_branch
    %1778 = sbr.rel (0) target = $region45
  $region44: #{saliency_gnn_forward.1} parent=0 // pred_region
    _
  $region45: #{saliency_gnn_forward.1} parent=0 // pred_fallthru
    _
  // Predicated region
  $region46: #{saliency_gnn_forward.1} parent=0 // pred_check
    _
  $region47: #{saliency_gnn_forward.1} parent=0 // pred_check_branch
    %1780 = sbr.rel (0) target = $region49
  $region48: #{saliency_gnn_forward.1} parent=0 // pred_region
    _
  $region49: #{saliency_gnn_forward.1} parent=0 // pred_fallthru
    _

</llo_original>
